<compile_context>
chip_gen: v5e
topology: v5e:2x2
jax: 0.10.0
libtpu: 0.0.40
codegen_flags: <defaults>
</compile_context>

<pallas_src>
import jax
import jax.numpy as jnp
from jax.experimental import pallas as pl
from jax.experimental.pallas import tpu as pltpu


def _round_up(v, m):
    return (v + m - 1) // m * m


def _default_compute_dtype():
    # bf16 MXU operands / bf16 xg stream on real TPUs; float32 elsewhere
    # (XLA:CPU's DotThunk does not support BF16 x BF16 = F32).
    return jnp.bfloat16 if jax.default_backend() == "tpu" else jnp.float32


def _vmem_limit_bytes():
    try:
        cap = int(pltpu.get_tpu_info().vmem_capacity_bytes)
    except Exception:
        cap = 128 * 1024 * 1024
    # Leave headroom for compiler-internal scratch / semaphores:
    # 64 MiB/TC (v7x) -> 48 MiB; 128 MiB (v5e/v6e) -> 96 MiB.
    return min((cap * 3) // 4, 100 * 1024 * 1024)


def _pick_blocks(S, Bp, Hp, xg_itemsize, w_itemsize, budget):
    """Pick (t_blk, b_blk) from an explicit VMEM budget."""
    b_cands = [c for c in (256, 128, 64, 32, 16, 8) if Bp % c == 0]
    if Bp >= 16:
        multi = [c for c in b_cands if Bp // c >= 2]   # keep >=2 batch blocks
        if multi:
            b_cands = multi

    t_cands = []
    for c in (16, 8, 4, 2, 1):
        sp = _round_up(S, c)
        if (sp - S) * 4 <= sp:        # tolerate <= 25% padded (masked) steps
            t_cands.append(c)

    fixed = Hp * 4 * Hp * w_itemsize                      # Wh, single buffered

    def cost(tb, bb):
        xg_blk = 2 * tb * bb * 4 * Hp * xg_itemsize       # double buffered
        state = 2 * bb * Hp * 4                           # h, c scratch (f32)
        outb = 2 * bb * Hp * 4                            # output block
        return fixed + xg_blk + state + outb

    for bb in b_cands:
        for tb in t_cands:
            if cost(tb, bb) <= budget:
                return tb, bb
    return t_cands[-1], b_cands[-1]


def _make_lstm_rec_kernel(s_actual, needs_mask):
    def kernel(xg_ref, wh_ref, hout_ref, h_sc, c_sc):
        """One grid step == one (batch block, time block).

        xg_ref  : (T_BLK, B_BLK, 4Hp)  precomputed x@Wx + b (gate cols f/i/o
                                        pre-scaled by 0.5), time-major
        wh_ref  : (Hp, 4Hp)            hidden->gates weights [f | i | c | o]
        hout_ref: (B_BLK, Hp) f32      final hidden state (written on last tt)
        h_sc,c_sc: (B_BLK, Hp) f32     recurrent state (persists over time axis)
        """
        t_idx = pl.program_id(1)
        n_t = pl.num_programs(1)
        t_blk = xg_ref.shape[0]
        hp = wh_ref.shape[0]

        @pl.when(t_idx == 0)
        def _():
            h_sc[...] = jnp.zeros_like(h_sc)
            c_sc[...] = jnp.zeros_like(c_sc)

        wh = wh_ref[...]
        h = h_sc[...]
        c = c_sc[...]

        # Statically unrolled time steps: MXU issue of step i+1 overlaps the
        # EUP tanh work of step i.
        for i in range(t_blk):
            gates = (xg_ref[i].astype(jnp.float32)
                     + jnp.dot(h.astype(wh.dtype), wh,
                               preferred_element_type=jnp.float32))
            # sigmoid(z) == 0.5*tanh(z/2) + 0.5; the f/i/o gate columns were
            # pre-scaled by 0.5, so one EUP tanh replaces each sigmoid.
            f = 0.5 * jnp.tanh(gates[:, 0 * hp:1 * hp]) + 0.5
            ig = 0.5 * jnp.tanh(gates[:, 1 * hp:2 * hp]) + 0.5
            ct = jnp.tanh(gates[:, 2 * hp:3 * hp])
            o = 0.5 * jnp.tanh(gates[:, 3 * hp:4 * hp]) + 0.5
            c_new = f * c + ig * ct
            h_new = o * jnp.tanh(c_new)
            if needs_mask:
                valid = (t_idx * t_blk + i) < s_actual
                c = jnp.where(valid, c_new, c)
                h = jnp.where(valid, h_new, h)
            else:
                c, h = c_new, h_new

        h_sc[...] = h
        c_sc[...] = c

        @pl.when(t_idx == n_t - 1)
        def _():
            hout_ref[...] = h

    return kernel


def lstm_forward(x, params, *, compute_dtype=None):
    """x: (batch, seq_len, input_size) float32. Returns (batch, output_size)."""
    if compute_dtype is None:
        compute_dtype = _default_compute_dtype()
    cd = jnp.dtype(compute_dtype)

    B, S, I = x.shape
    wx, wh, b, fcw, fcb = (params['wx'], params['wh'], params['b'],
                           params['fcw'], params['fcb'])
    H = wh.shape[0]
    O = fcw.shape[1]

    # ---- pad to hardware-friendly shapes (lane = 128, sublane = 8) ----------
    Hp = _round_up(H, 128)
    Bp = _round_up(B, 8)

    def pad_gate_cols(w):  # (..., 4H) -> (..., 4Hp), each gate slab lane-aligned
        parts = []
        for g in range(4):
            p = w[..., g * H:(g + 1) * H]
            pad_cfg = [(0, 0)] * (w.ndim - 1) + [(0, Hp - H)]
            parts.append(jnp.pad(p, pad_cfg))
        return jnp.concatenate(parts, axis=-1)

    # Pre-scale f/i/o gate columns by 0.5 (sigmoid -> tanh rewrite in-kernel).
    gate_scale = jnp.concatenate([
        jnp.full((Hp,), 0.5, jnp.float32),    # f
        jnp.full((Hp,), 0.5, jnp.float32),    # i
        jnp.ones((Hp,), jnp.float32),         # c~ (plain tanh)
        jnp.full((Hp,), 0.5, jnp.float32),    # o
    ])

    wx_p = pad_gate_cols(wx) * gate_scale                                  # (I, 4Hp)
    wh_p = jnp.pad(pad_gate_cols(wh), ((0, Hp - H), (0, 0))) * gate_scale  # (Hp, 4Hp)
    b_p = pad_gate_cols(b.reshape(1, 4 * H)) * gate_scale                  # (1, 4Hp)
    x_p = jnp.pad(x, ((0, Bp - B), (0, 0), (0, 0)))                        # (Bp, S, I)

    # ---- hoisted input projection (+ folded gate bias), time-major ----------
    # One big MXU matmul; stored in the compute dtype (bf16 on TPU halves the
    # streamed HBM bytes and the largest double-buffered VMEM block).
    xg = jnp.einsum('bsi,ig->sbg', x_p.astype(cd), wx_p.astype(cd),
                    preferred_element_type=jnp.float32) + b_p
    xg = xg.astype(cd)                                                     # (S, Bp, 4Hp)

    wh_c = wh_p.astype(cd)
    w_itemsize = cd.itemsize
    xg_itemsize = cd.itemsize

    # ---- block sizes from an explicit VMEM budget ----------------------------
    vmem_limit = _vmem_limit_bytes()
    t_blk, b_blk = _pick_blocks(S, Bp, Hp, xg_itemsize, w_itemsize,
                                (vmem_limit * 4) // 5)
    Sp = _round_up(S, t_blk)
    needs_mask = (Sp != S)
    if needs_mask:
        xg = jnp.pad(xg, ((0, Sp - S), (0, 0), (0, 0)))

    flops = 2 * Sp * Bp * Hp * (4 * Hp)
    transcendentals = 5 * Sp * Bp * Hp
    bytes_accessed = (xg_itemsize * Sp * Bp * 4 * Hp
                      + w_itemsize * Hp * 4 * Hp
                      + 4 * Bp * Hp)

    h_final = pl.pallas_call(
        _make_lstm_rec_kernel(S, needs_mask),
        out_shape=jax.ShapeDtypeStruct((Bp, Hp), jnp.float32),
        grid_spec=pltpu.PrefetchScalarGridSpec(
            num_scalar_prefetch=0,
            grid=(Bp // b_blk, Sp // t_blk),
            in_specs=[
                pl.BlockSpec((t_blk, b_blk, 4 * Hp), lambda bb, tt: (tt, bb, 0)),  # xg
                pl.BlockSpec((Hp, 4 * Hp), lambda bb, tt: (0, 0),
                             pipeline_mode=pl.Buffered(1)),                        # Wh
            ],
            out_specs=pl.BlockSpec((b_blk, Hp), lambda bb, tt: (bb, 0)),
            scratch_shapes=[
                pltpu.VMEM((b_blk, Hp), jnp.float32),   # h state
                pltpu.VMEM((b_blk, Hp), jnp.float32),   # c state
            ],
        ),
        compiler_params=pltpu.CompilerParams(
            dimension_semantics=("parallel", "arbitrary"),  # batch || , time seq
            vmem_limit_bytes=vmem_limit,
        ),
        cost_estimate=pl.CostEstimate(
            flops=flops,
            transcendentals=transcendentals,
            bytes_accessed=bytes_accessed,
        ),
    )(xg, wh_c)

    # Epilogue in XLA (keeps fc weights out of the kernel's resident VMEM).
    # Dropout is identity at inference (PyTorch nn.Dropout eval mode).
    # TODO(synk): training-mode dropout (random mask + 1/(1-p)) not applied.
    h = h_final[:B, :H]
    out = jnp.dot(h, fcw, preferred_element_type=jnp.float32) + fcb[None, :]
    return jnp.where(out >= 0.0, out, 0.01 * out)   # LeakyReLU(0.01)


def init_params(key, input_size, hidden_size, output_size):
    """Deterministic init matching the module's parameter shapes.

    CustomLSTMCell: Wf/Wi/Wc/Wo (I+H, H) xavier-uniform, biases zero.
    fc: nn.Linear(H, O); stored here as (H, O) plus bias (O,).
    Gate order is [f | i | c | o] (matches this custom cell, NOT stock nn.LSTM).
    """
    ks = jax.random.split(key, 5)

    def xavier(k, shape):
        fan_in, fan_out = shape
        bound = (6.0 / (fan_in + fan_out)) ** 0.5
        return jax.random.uniform(k, shape, jnp.float32, -bound, bound)

    IH = input_size + hidden_size
    Wf = xavier(ks[0], (IH, hidden_size))
    Wi = xavier(ks[1], (IH, hidden_size))
    Wc = xavier(ks[2], (IH, hidden_size))
    Wo = xavier(ks[3], (IH, hidden_size))
    W_all = jnp.concatenate([Wf, Wi, Wc, Wo], axis=1)    # (I+H, 4H)
    wx = W_all[:input_size, :]                           # (I, 4H)
    wh = W_all[input_size:, :]                           # (H, 4H)
    b = jnp.zeros((4 * hidden_size,), jnp.float32)

    fcw = xavier(ks[4], (hidden_size, output_size))      # (H, O)
    fcb = jnp.zeros((output_size,), jnp.float32)
    return {'wx': wx, 'wh': wh, 'b': b, 'fcw': fcw, 'fcb': fcb}


def _reference_forward(x, params, compute_dtype=jnp.float32):
    """Pure-JAX reference of the PyTorch forward (eval mode)."""
    cd = jnp.dtype(compute_dtype)
    B, S, _ = x.shape
    H = params['wh'].shape[0]
    wx = params['wx'].astype(cd)
    wh = params['wh'].astype(cd)
    b = params['b'][None, :]
    fcw = params['fcw']
    fcb = params['fcb'][None, :]

    h = jnp.zeros((B, H), jnp.float32)
    c = jnp.zeros((B, H), jnp.float32)
    for t in range(S):
        gates = (jnp.dot(x[:, t, :].astype(cd), wx, preferred_element_type=jnp.float32)
                 + jnp.dot(h.astype(cd), wh, preferred_element_type=jnp.float32)
                 + b)
        f = jax.nn.sigmoid(gates[:, 0 * H:1 * H])
        i = jax.nn.sigmoid(gates[:, 1 * H:2 * H])
        ct = jnp.tanh(gates[:, 2 * H:3 * H])
        o = jax.nn.sigmoid(gates[:, 3 * H:4 * H])
        c = f * c + i * ct
        h = o * jnp.tanh(c)
    out = jnp.dot(h, fcw, preferred_element_type=jnp.float32) + fcb
    return jnp.where(out >= 0.0, out, 0.01 * out)


if __name__ == "__main__":
    batch, seq_len = 4, 8
    input_size, hidden_size, output_size = 16, 32, 8

    key = jax.random.PRNGKey(0)
    k_x, k_p = jax.random.split(key)
    x = jax.random.normal(k_x, (batch, seq_len, input_size), jnp.float32)
    params = init_params(k_p, input_size, hidden_size, output_size)

    cd = jnp.dtype(_default_compute_dtype())
    tol = 1e-3 if cd == jnp.dtype(jnp.float32) else 5e-2

    # Main path (S divisible by the time block).
    out = jax.block_until_ready(lstm_forward(x, params))
    ref = _reference_forward(x, params, cd)
    assert out.shape == (batch, output_size), out.shape
    assert jnp.allclose(out, ref, atol=tol, rtol=tol), \
        float(jnp.max(jnp.abs(out - ref)))

    # Awkward sequence length: exercises the S-padding + masked-update path.
    x5 = x[:, :5, :]
    out5 = jax.block_until_ready(lstm_forward(x5, params))
    ref5 = _reference_forward(x5, params, cd)
    assert out5.shape == (batch, output_size), out5.shape
    assert jnp.allclose(out5, ref5, atol=tol, rtol=tol), \
        float(jnp.max(jnp.abs(out5 - ref5)))

    print("KERNEL_OK")
</pallas_src>

<mosaic_0001>
module attributes {stable_mosaic.version = 11 : i64} {
  func.func @kernel(%arg0: i32, %arg1: i32, %arg2: memref<8x8x512xf32, #tpu.memory_space<vmem>>, %arg3: memref<128x512xf32, #tpu.memory_space<vmem>>, %arg4: memref<8x128xf32, #tpu.memory_space<vmem>>, %arg5: memref<8x128xf32, #tpu.memory_space<vmem>>, %arg6: memref<8x128xf32, #tpu.memory_space<vmem>>) attributes {dimension_semantics = [#tpu.dimension_semantics<parallel>, #tpu.dimension_semantics<arbitrary>], iteration_bounds = array<i64: 1, 1>, scalar_prefetch = 0 : i64, scratch_operands = 2 : i64, tpu.core_type = #tpu.core_type<tc>, window_params = [{transform_indices = @transform_0, window_bounds = array<i64: 8, 8, 512>}, {pipeline_mode = #tpu.pipeline_mode<synchronous>, transform_indices = @transform_1, window_bounds = array<i64: 128, 512>}, {transform_indices = @transform_2, window_bounds = array<i64: 8, 128>}]} {
    %c0_i32 = arith.constant 0 : i32
    %0 = arith.cmpi eq, %arg1, %c0_i32 : i32
    %1 = arith.extui %0 : i1 to i32
    %c0_i32_0 = arith.constant 0 : i32
    %2 = arith.cmpi ne, %1, %c0_i32_0 : i32
    scf.if %2 {
      %cst_84 = arith.constant 0.000000e+00 : f32
      %243 = vector.broadcast %cst_84 : f32 to vector<8x128xf32>
      %c0_85 = arith.constant 0 : index
      %c0_86 = arith.constant 0 : index
      %244 = vector.load %arg5[%c0_85, %c0_86] : memref<8x128xf32, #tpu.memory_space<vmem>>, vector<8x128xf32>
      tpu.vector_store %arg5[%c0_85, %c0_86], %243 {strides = array<i32>} : memref<8x128xf32, #tpu.memory_space<vmem>>, vector<8x128xf32>,
      %cst_87 = arith.constant 0.000000e+00 : f32
      %245 = vector.broadcast %cst_87 : f32 to vector<8x128xf32>
      %c0_88 = arith.constant 0 : index
      %c0_89 = arith.constant 0 : index
      %246 = vector.load %arg6[%c0_88, %c0_89] : memref<8x128xf32, #tpu.memory_space<vmem>>, vector<8x128xf32>
      tpu.vector_store %arg6[%c0_88, %c0_89], %245 {strides = array<i32>} : memref<8x128xf32, #tpu.memory_space<vmem>>, vector<8x128xf32>,
    } else {
    }
    %c0 = arith.constant 0 : index
    %c0_1 = arith.constant 0 : index
    %3 = vector.load %arg3[%c0, %c0_1] : memref<128x512xf32, #tpu.memory_space<vmem>>, vector<128x512xf32>
    %c0_2 = arith.constant 0 : index
    %c0_3 = arith.constant 0 : index
    %4 = vector.load %arg5[%c0_2, %c0_3] : memref<8x128xf32, #tpu.memory_space<vmem>>, vector<8x128xf32>
    %c0_4 = arith.constant 0 : index
    %c0_5 = arith.constant 0 : index
    %5 = vector.load %arg6[%c0_4, %c0_5] : memref<8x128xf32, #tpu.memory_space<vmem>>, vector<8x128xf32>
    %c0_6 = arith.constant 0 : index
    %c0_7 = arith.constant 0 : index
    %c0_8 = arith.constant 0 : index
    %6 = vector.load %arg2[%c0_6, %c0_7, %c0_8] : memref<8x8x512xf32, #tpu.memory_space<vmem>>, vector<1x8x512xf32>
    %7 = vector.shape_cast %6 : vector<1x8x512xf32> to vector<8x512xf32>
    %cst = arith.constant dense<0.000000e+00> : vector<8x512xf32>
    %8 = tpu.matmul %4, %3, %cst {dimension_numbers = #tpu.dot_dimension_numbers<[1], [0], [0], [1], [0, 0, 1, 1], [], []>} : vector<8x128xf32>, vector<128x512xf32>, vector<8x512xf32> -> vector<8x512xf32>
    %9 = arith.addf %7, %8 : vector<8x512xf32>
    %10 = vector.extract_strided_slice %9 {offsets = [0, 0], sizes = [8, 128], strides = [1, 1]} : vector<8x512xf32> to vector<8x128xf32>
    %11 = math.tanh %10 : vector<8x128xf32>
    %cst_9 = arith.constant 5.000000e-01 : f32
    %12 = vector.broadcast %cst_9 : f32 to vector<8x128xf32>
    %13 = arith.mulf %12, %11 : vector<8x128xf32>
    %cst_10 = arith.constant 5.000000e-01 : f32
    %14 = vector.broadcast %cst_10 : f32 to vector<8x128xf32>
    %15 = arith.addf %13, %14 : vector<8x128xf32>
    %16 = vector.extract_strided_slice %9 {offsets = [0, 128], sizes = [8, 128], strides = [1, 1]} : vector<8x512xf32> to vector<8x128xf32>
    %17 = math.tanh %16 : vector<8x128xf32>
    %cst_11 = arith.constant 5.000000e-01 : f32
    %18 = vector.broadcast %cst_11 : f32 to vector<8x128xf32>
    %19 = arith.mulf %18, %17 : vector<8x128xf32>
    %cst_12 = arith.constant 5.000000e-01 : f32
    %20 = vector.broadcast %cst_12 : f32 to vector<8x128xf32>
    %21 = arith.addf %19, %20 : vector<8x128xf32>
    %22 = vector.extract_strided_slice %9 {offsets = [0, 256], sizes = [8, 128], strides = [1, 1]} : vector<8x512xf32> to vector<8x128xf32>
    %23 = math.tanh %22 : vector<8x128xf32>
    %24 = vector.extract_strided_slice %9 {offsets = [0, 384], sizes = [8, 128], strides = [1, 1]} : vector<8x512xf32> to vector<8x128xf32>
    %25 = math.tanh %24 : vector<8x128xf32>
    %cst_13 = arith.constant 5.000000e-01 : f32
    %26 = vector.broadcast %cst_13 : f32 to vector<8x128xf32>
    %27 = arith.mulf %26, %25 : vector<8x128xf32>
    %cst_14 = arith.constant 5.000000e-01 : f32
    %28 = vector.broadcast %cst_14 : f32 to vector<8x128xf32>
    %29 = arith.addf %27, %28 : vector<8x128xf32>
    %30 = arith.mulf %15, %5 : vector<8x128xf32>
    %31 = arith.mulf %21, %23 : vector<8x128xf32>
    %32 = arith.addf %30, %31 : vector<8x128xf32>
    %33 = math.tanh %32 : vector<8x128xf32>
    %34 = arith.mulf %29, %33 : vector<8x128xf32>
    %c1 = arith.constant 1 : index
    %c0_15 = arith.constant 0 : index
    %c0_16 = arith.constant 0 : index
    %35 = vector.load %arg2[%c1, %c0_15, %c0_16] : memref<8x8x512xf32, #tpu.memory_space<vmem>>, vector<1x8x512xf32>
    %36 = vector.shape_cast %35 : vector<1x8x512xf32> to vector<8x512xf32>
    %cst_17 = arith.constant dense<0.000000e+00> : vector<8x512xf32>
    %37 = tpu.matmul %34, %3, %cst_17 {dimension_numbers = #tpu.dot_dimension_numbers<[1], [0], [0], [1], [0, 0, 1, 1], [], []>} : vector<8x128xf32>, vector<128x512xf32>, vector<8x512xf32> -> vector<8x512xf32>
    %38 = arith.addf %36, %37 : vector<8x512xf32>
    %39 = vector.extract_strided_slice %38 {offsets = [0, 0], sizes = [8, 128], strides = [1, 1]} : vector<8x512xf32> to vector<8x128xf32>
    %40 = math.tanh %39 : vector<8x128xf32>
    %cst_18 = arith.constant 5.000000e-01 : f32
    %41 = vector.broadcast %cst_18 : f32 to vector<8x128xf32>
    %42 = arith.mulf %41, %40 : vector<8x128xf32>
    %cst_19 = arith.constant 5.000000e-01 : f32
    %43 = vector.broadcast %cst_19 : f32 to vector<8x128xf32>
    %44 = arith.addf %42, %43 : vector<8x128xf32>
    %45 = vector.extract_strided_slice %38 {offsets = [0, 128], sizes = [8, 128], strides = [1, 1]} : vector<8x512xf32> to vector<8x128xf32>
    %46 = math.tanh %45 : vector<8x128xf32>
    %cst_20 = arith.constant 5.000000e-01 : f32
    %47 = vector.broadcast %cst_20 : f32 to vector<8x128xf32>
    %48 = arith.mulf %47, %46 : vector<8x128xf32>
    %cst_21 = arith.constant 5.000000e-01 : f32
    %49 = vector.broadcast %cst_21 : f32 to vector<8x128xf32>
    %50 = arith.addf %48, %49 : vector<8x128xf32>
    %51 = vector.extract_strided_slice %38 {offsets = [0, 256], sizes = [8, 128], strides = [1, 1]} : vector<8x512xf32> to vector<8x128xf32>
    %52 = math.tanh %51 : vector<8x128xf32>
    %53 = vector.extract_strided_slice %38 {offsets = [0, 384], sizes = [8, 128], strides = [1, 1]} : vector<8x512xf32> to vector<8x128xf32>
    %54 = math.tanh %53 : vector<8x128xf32>
    %cst_22 = arith.constant 5.000000e-01 : f32
    %55 = vector.broadcast %cst_22 : f32 to vector<8x128xf32>
    %56 = arith.mulf %55, %54 : vector<8x128xf32>
    %cst_23 = arith.constant 5.000000e-01 : f32
    %57 = vector.broadcast %cst_23 : f32 to vector<8x128xf32>
    %58 = arith.addf %56, %57 : vector<8x128xf32>
    %59 = arith.mulf %44, %32 : vector<8x128xf32>
    %60 = arith.mulf %50, %52 : vector<8x128xf32>
    %61 = arith.addf %59, %60 : vector<8x128xf32>
    %62 = math.tanh %61 : vector<8x128xf32>
    %63 = arith.mulf %58, %62 : vector<8x128xf32>
    %c2 = arith.constant 2 : index
    %c0_24 = arith.constant 0 : index
    %c0_25 = arith.constant 0 : index
    %64 = vector.load %arg2[%c2, %c0_24, %c0_25] : memref<8x8x512xf32, #tpu.memory_space<vmem>>, vector<1x8x512xf32>
    %65 = vector.shape_cast %64 : vector<1x8x512xf32> to vector<8x512xf32>
    %cst_26 = arith.constant dense<0.000000e+00> : vector<8x512xf32>
    %66 = tpu.matmul %63, %3, %cst_26 {dimension_numbers = #tpu.dot_dimension_numbers<[1], [0], [0], [1], [0, 0, 1, 1], [], []>} : vector<8x128xf32>, vector<128x512xf32>, vector<8x512xf32> -> vector<8x512xf32>
    %67 = arith.addf %65, %66 : vector<8x512xf32>
    %68 = vector.extract_strided_slice %67 {offsets = [0, 0], sizes = [8, 128], strides = [1, 1]} : vector<8x512xf32> to vector<8x128xf32>
    %69 = math.tanh %68 : vector<8x128xf32>
    %cst_27 = arith.constant 5.000000e-01 : f32
    %70 = vector.broadcast %cst_27 : f32 to vector<8x128xf32>
    %71 = arith.mulf %70, %69 : vector<8x128xf32>
    %cst_28 = arith.constant 5.000000e-01 : f32
    %72 = vector.broadcast %cst_28 : f32 to vector<8x128xf32>
    %73 = arith.addf %71, %72 : vector<8x128xf32>
    %74 = vector.extract_strided_slice %67 {offsets = [0, 128], sizes = [8, 128], strides = [1, 1]} : vector<8x512xf32> to vector<8x128xf32>
    %75 = math.tanh %74 : vector<8x128xf32>
    %cst_29 = arith.constant 5.000000e-01 : f32
    %76 = vector.broadcast %cst_29 : f32 to vector<8x128xf32>
    %77 = arith.mulf %76, %75 : vector<8x128xf32>
    %cst_30 = arith.constant 5.000000e-01 : f32
    %78 = vector.broadcast %cst_30 : f32 to vector<8x128xf32>
    %79 = arith.addf %77, %78 : vector<8x128xf32>
    %80 = vector.extract_strided_slice %67 {offsets = [0, 256], sizes = [8, 128], strides = [1, 1]} : vector<8x512xf32> to vector<8x128xf32>
    %81 = math.tanh %80 : vector<8x128xf32>
    %82 = vector.extract_strided_slice %67 {offsets = [0, 384], sizes = [8, 128], strides = [1, 1]} : vector<8x512xf32> to vector<8x128xf32>
    %83 = math.tanh %82 : vector<8x128xf32>
    %cst_31 = arith.constant 5.000000e-01 : f32
    %84 = vector.broadcast %cst_31 : f32 to vector<8x128xf32>
    %85 = arith.mulf %84, %83 : vector<8x128xf32>
    %cst_32 = arith.constant 5.000000e-01 : f32
    %86 = vector.broadcast %cst_32 : f32 to vector<8x128xf32>
    %87 = arith.addf %85, %86 : vector<8x128xf32>
    %88 = arith.mulf %73, %61 : vector<8x128xf32>
    %89 = arith.mulf %79, %81 : vector<8x128xf32>
    %90 = arith.addf %88, %89 : vector<8x128xf32>
    %91 = math.tanh %90 : vector<8x128xf32>
    %92 = arith.mulf %87, %91 : vector<8x128xf32>
    %c3 = arith.constant 3 : index
    %c0_33 = arith.constant 0 : index
    %c0_34 = arith.constant 0 : index
    %93 = vector.load %arg2[%c3, %c0_33, %c0_34] : memref<8x8x512xf32, #tpu.memory_space<vmem>>, vector<1x8x512xf32>
    %94 = vector.shape_cast %93 : vector<1x8x512xf32> to vector<8x512xf32>
    %cst_35 = arith.constant dense<0.000000e+00> : vector<8x512xf32>
    %95 = tpu.matmul %92, %3, %cst_35 {dimension_numbers = #tpu.dot_dimension_numbers<[1], [0], [0], [1], [0, 0, 1, 1], [], []>} : vector<8x128xf32>, vector<128x512xf32>, vector<8x512xf32> -> vector<8x512xf32>
    %96 = arith.addf %94, %95 : vector<8x512xf32>
    %97 = vector.extract_strided_slice %96 {offsets = [0, 0], sizes = [8, 128], strides = [1, 1]} : vector<8x512xf32> to vector<8x128xf32>
    %98 = math.tanh %97 : vector<8x128xf32>
    %cst_36 = arith.constant 5.000000e-01 : f32
    %99 = vector.broadcast %cst_36 : f32 to vector<8x128xf32>
    %100 = arith.mulf %99, %98 : vector<8x128xf32>
    %cst_37 = arith.constant 5.000000e-01 : f32
    %101 = vector.broadcast %cst_37 : f32 to vector<8x128xf32>
    %102 = arith.addf %100, %101 : vector<8x128xf32>
    %103 = vector.extract_strided_slice %96 {offsets = [0, 128], sizes = [8, 128], strides = [1, 1]} : vector<8x512xf32> to vector<8x128xf32>
    %104 = math.tanh %103 : vector<8x128xf32>
    %cst_38 = arith.constant 5.000000e-01 : f32
    %105 = vector.broadcast %cst_38 : f32 to vector<8x128xf32>
    %106 = arith.mulf %105, %104 : vector<8x128xf32>
    %cst_39 = arith.constant 5.000000e-01 : f32
    %107 = vector.broadcast %cst_39 : f32 to vector<8x128xf32>
    %108 = arith.addf %106, %107 : vector<8x128xf32>
    %109 = vector.extract_strided_slice %96 {offsets = [0, 256], sizes = [8, 128], strides = [1, 1]} : vector<8x512xf32> to vector<8x128xf32>
    %110 = math.tanh %109 : vector<8x128xf32>
    %111 = vector.extract_strided_slice %96 {offsets = [0, 384], sizes = [8, 128], strides = [1, 1]} : vector<8x512xf32> to vector<8x128xf32>
    %112 = math.tanh %111 : vector<8x128xf32>
    %cst_40 = arith.constant 5.000000e-01 : f32
    %113 = vector.broadcast %cst_40 : f32 to vector<8x128xf32>
    %114 = arith.mulf %113, %112 : vector<8x128xf32>
    %cst_41 = arith.constant 5.000000e-01 : f32
    %115 = vector.broadcast %cst_41 : f32 to vector<8x128xf32>
    %116 = arith.addf %114, %115 : vector<8x128xf32>
    %117 = arith.mulf %102, %90 : vector<8x128xf32>
    %118 = arith.mulf %108, %110 : vector<8x128xf32>
    %119 = arith.addf %117, %118 : vector<8x128xf32>
    %120 = math.tanh %119 : vector<8x128xf32>
    %121 = arith.mulf %116, %120 : vector<8x128xf32>
    %c4 = arith.constant 4 : index
    %c0_42 = arith.constant 0 : index
    %c0_43 = arith.constant 0 : index
    %122 = vector.load %arg2[%c4, %c0_42, %c0_43] : memref<8x8x512xf32, #tpu.memory_space<vmem>>, vector<1x8x512xf32>
    %123 = vector.shape_cast %122 : vector<1x8x512xf32> to vector<8x512xf32>
    %cst_44 = arith.constant dense<0.000000e+00> : vector<8x512xf32>
    %124 = tpu.matmul %121, %3, %cst_44 {dimension_numbers = #tpu.dot_dimension_numbers<[1], [0], [0], [1], [0, 0, 1, 1], [], []>} : vector<8x128xf32>, vector<128x512xf32>, vector<8x512xf32> -> vector<8x512xf32>
    %125 = arith.addf %123, %124 : vector<8x512xf32>
    %126 = vector.extract_strided_slice %125 {offsets = [0, 0], sizes = [8, 128], strides = [1, 1]} : vector<8x512xf32> to vector<8x128xf32>
    %127 = math.tanh %126 : vector<8x128xf32>
    %cst_45 = arith.constant 5.000000e-01 : f32
    %128 = vector.broadcast %cst_45 : f32 to vector<8x128xf32>
    %129 = arith.mulf %128, %127 : vector<8x128xf32>
    %cst_46 = arith.constant 5.000000e-01 : f32
    %130 = vector.broadcast %cst_46 : f32 to vector<8x128xf32>
    %131 = arith.addf %129, %130 : vector<8x128xf32>
    %132 = vector.extract_strided_slice %125 {offsets = [0, 128], sizes = [8, 128], strides = [1, 1]} : vector<8x512xf32> to vector<8x128xf32>
    %133 = math.tanh %132 : vector<8x128xf32>
    %cst_47 = arith.constant 5.000000e-01 : f32
    %134 = vector.broadcast %cst_47 : f32 to vector<8x128xf32>
    %135 = arith.mulf %134, %133 : vector<8x128xf32>
    %cst_48 = arith.constant 5.000000e-01 : f32
    %136 = vector.broadcast %cst_48 : f32 to vector<8x128xf32>
    %137 = arith.addf %135, %136 : vector<8x128xf32>
    %138 = vector.extract_strided_slice %125 {offsets = [0, 256], sizes = [8, 128], strides = [1, 1]} : vector<8x512xf32> to vector<8x128xf32>
    %139 = math.tanh %138 : vector<8x128xf32>
    %140 = vector.extract_strided_slice %125 {offsets = [0, 384], sizes = [8, 128], strides = [1, 1]} : vector<8x512xf32> to vector<8x128xf32>
    %141 = math.tanh %140 : vector<8x128xf32>
    %cst_49 = arith.constant 5.000000e-01 : f32
    %142 = vector.broadcast %cst_49 : f32 to vector<8x128xf32>
    %143 = arith.mulf %142, %141 : vector<8x128xf32>
    %cst_50 = arith.constant 5.000000e-01 : f32
    %144 = vector.broadcast %cst_50 : f32 to vector<8x128xf32>
    %145 = arith.addf %143, %144 : vector<8x128xf32>
    %146 = arith.mulf %131, %119 : vector<8x128xf32>
    %147 = arith.mulf %137, %139 : vector<8x128xf32>
    %148 = arith.addf %146, %147 : vector<8x128xf32>
    %149 = math.tanh %148 : vector<8x128xf32>
    %150 = arith.mulf %145, %149 : vector<8x128xf32>
    %c5 = arith.constant 5 : index
    %c0_51 = arith.constant 0 : index
    %c0_52 = arith.constant 0 : index
    %151 = vector.load %arg2[%c5, %c0_51, %c0_52] : memref<8x8x512xf32, #tpu.memory_space<vmem>>, vector<1x8x512xf32>
    %152 = vector.shape_cast %151 : vector<1x8x512xf32> to vector<8x512xf32>
    %cst_53 = arith.constant dense<0.000000e+00> : vector<8x512xf32>
    %153 = tpu.matmul %150, %3, %cst_53 {dimension_numbers = #tpu.dot_dimension_numbers<[1], [0], [0], [1], [0, 0, 1, 1], [], []>} : vector<8x128xf32>, vector<128x512xf32>, vector<8x512xf32> -> vector<8x512xf32>
    %154 = arith.addf %152, %153 : vector<8x512xf32>
    %155 = vector.extract_strided_slice %154 {offsets = [0, 0], sizes = [8, 128], strides = [1, 1]} : vector<8x512xf32> to vector<8x128xf32>
    %156 = math.tanh %155 : vector<8x128xf32>
    %cst_54 = arith.constant 5.000000e-01 : f32
    %157 = vector.broadcast %cst_54 : f32 to vector<8x128xf32>
    %158 = arith.mulf %157, %156 : vector<8x128xf32>
    %cst_55 = arith.constant 5.000000e-01 : f32
    %159 = vector.broadcast %cst_55 : f32 to vector<8x128xf32>
    %160 = arith.addf %158, %159 : vector<8x128xf32>
    %161 = vector.extract_strided_slice %154 {offsets = [0, 128], sizes = [8, 128], strides = [1, 1]} : vector<8x512xf32> to vector<8x128xf32>
    %162 = math.tanh %161 : vector<8x128xf32>
    %cst_56 = arith.constant 5.000000e-01 : f32
    %163 = vector.broadcast %cst_56 : f32 to vector<8x128xf32>
    %164 = arith.mulf %163, %162 : vector<8x128xf32>
    %cst_57 = arith.constant 5.000000e-01 : f32
    %165 = vector.broadcast %cst_57 : f32 to vector<8x128xf32>
    %166 = arith.addf %164, %165 : vector<8x128xf32>
    %167 = vector.extract_strided_slice %154 {offsets = [0, 256], sizes = [8, 128], strides = [1, 1]} : vector<8x512xf32> to vector<8x128xf32>
    %168 = math.tanh %167 : vector<8x128xf32>
    %169 = vector.extract_strided_slice %154 {offsets = [0, 384], sizes = [8, 128], strides = [1, 1]} : vector<8x512xf32> to vector<8x128xf32>
    %170 = math.tanh %169 : vector<8x128xf32>
    %cst_58 = arith.constant 5.000000e-01 : f32
    %171 = vector.broadcast %cst_58 : f32 to vector<8x128xf32>
    %172 = arith.mulf %171, %170 : vector<8x128xf32>
    %cst_59 = arith.constant 5.000000e-01 : f32
    %173 = vector.broadcast %cst_59 : f32 to vector<8x128xf32>
    %174 = arith.addf %172, %173 : vector<8x128xf32>
    %175 = arith.mulf %160, %148 : vector<8x128xf32>
    %176 = arith.mulf %166, %168 : vector<8x128xf32>
    %177 = arith.addf %175, %176 : vector<8x128xf32>
    %178 = math.tanh %177 : vector<8x128xf32>
    %179 = arith.mulf %174, %178 : vector<8x128xf32>
    %c6 = arith.constant 6 : index
    %c0_60 = arith.constant 0 : index
    %c0_61 = arith.constant 0 : index
    %180 = vector.load %arg2[%c6, %c0_60, %c0_61] : memref<8x8x512xf32, #tpu.memory_space<vmem>>, vector<1x8x512xf32>
    %181 = vector.shape_cast %180 : vector<1x8x512xf32> to vector<8x512xf32>
    %cst_62 = arith.constant dense<0.000000e+00> : vector<8x512xf32>
    %182 = tpu.matmul %179, %3, %cst_62 {dimension_numbers = #tpu.dot_dimension_numbers<[1], [0], [0], [1], [0, 0, 1, 1], [], []>} : vector<8x128xf32>, vector<128x512xf32>, vector<8x512xf32> -> vector<8x512xf32>
    %183 = arith.addf %181, %182 : vector<8x512xf32>
    %184 = vector.extract_strided_slice %183 {offsets = [0, 0], sizes = [8, 128], strides = [1, 1]} : vector<8x512xf32> to vector<8x128xf32>
    %185 = math.tanh %184 : vector<8x128xf32>
    %cst_63 = arith.constant 5.000000e-01 : f32
    %186 = vector.broadcast %cst_63 : f32 to vector<8x128xf32>
    %187 = arith.mulf %186, %185 : vector<8x128xf32>
    %cst_64 = arith.constant 5.000000e-01 : f32
    %188 = vector.broadcast %cst_64 : f32 to vector<8x128xf32>
    %189 = arith.addf %187, %188 : vector<8x128xf32>
    %190 = vector.extract_strided_slice %183 {offsets = [0, 128], sizes = [8, 128], strides = [1, 1]} : vector<8x512xf32> to vector<8x128xf32>
    %191 = math.tanh %190 : vector<8x128xf32>
    %cst_65 = arith.constant 5.000000e-01 : f32
    %192 = vector.broadcast %cst_65 : f32 to vector<8x128xf32>
    %193 = arith.mulf %192, %191 : vector<8x128xf32>
    %cst_66 = arith.constant 5.000000e-01 : f32
    %194 = vector.broadcast %cst_66 : f32 to vector<8x128xf32>
    %195 = arith.addf %193, %194 : vector<8x128xf32>
    %196 = vector.extract_strided_slice %183 {offsets = [0, 256], sizes = [8, 128], strides = [1, 1]} : vector<8x512xf32> to vector<8x128xf32>
    %197 = math.tanh %196 : vector<8x128xf32>
    %198 = vector.extract_strided_slice %183 {offsets = [0, 384], sizes = [8, 128], strides = [1, 1]} : vector<8x512xf32> to vector<8x128xf32>
    %199 = math.tanh %198 : vector<8x128xf32>
    %cst_67 = arith.constant 5.000000e-01 : f32
    %200 = vector.broadcast %cst_67 : f32 to vector<8x128xf32>
    %201 = arith.mulf %200, %199 : vector<8x128xf32>
    %cst_68 = arith.constant 5.000000e-01 : f32
    %202 = vector.broadcast %cst_68 : f32 to vector<8x128xf32>
    %203 = arith.addf %201, %202 : vector<8x128xf32>
    %204 = arith.mulf %189, %177 : vector<8x128xf32>
    %205 = arith.mulf %195, %197 : vector<8x128xf32>
    %206 = arith.addf %204, %205 : vector<8x128xf32>
    %207 = math.tanh %206 : vector<8x128xf32>
    %208 = arith.mulf %203, %207 : vector<8x128xf32>
    %c7 = arith.constant 7 : index
    %c0_69 = arith.constant 0 : index
    %c0_70 = arith.constant 0 : index
    %209 = vector.load %arg2[%c7, %c0_69, %c0_70] : memref<8x8x512xf32, #tpu.memory_space<vmem>>, vector<1x8x512xf32>
    %210 = vector.shape_cast %209 : vector<1x8x512xf32> to vector<8x512xf32>
    %cst_71 = arith.constant dense<0.000000e+00> : vector<8x512xf32>
    %211 = tpu.matmul %208, %3, %cst_71 {dimension_numbers = #tpu.dot_dimension_numbers<[1], [0], [0], [1], [0, 0, 1, 1], [], []>} : vector<8x128xf32>, vector<128x512xf32>, vector<8x512xf32> -> vector<8x512xf32>
    %212 = arith.addf %210, %211 : vector<8x512xf32>
    %213 = vector.extract_strided_slice %212 {offsets = [0, 0], sizes = [8, 128], strides = [1, 1]} : vector<8x512xf32> to vector<8x128xf32>
    %214 = math.tanh %213 : vector<8x128xf32>
    %cst_72 = arith.constant 5.000000e-01 : f32
    %215 = vector.broadcast %cst_72 : f32 to vector<8x128xf32>
    %216 = arith.mulf %215, %214 : vector<8x128xf32>
    %cst_73 = arith.constant 5.000000e-01 : f32
    %217 = vector.broadcast %cst_73 : f32 to vector<8x128xf32>
    %218 = arith.addf %216, %217 : vector<8x128xf32>
    %219 = vector.extract_strided_slice %212 {offsets = [0, 128], sizes = [8, 128], strides = [1, 1]} : vector<8x512xf32> to vector<8x128xf32>
    %220 = math.tanh %219 : vector<8x128xf32>
    %cst_74 = arith.constant 5.000000e-01 : f32
    %221 = vector.broadcast %cst_74 : f32 to vector<8x128xf32>
    %222 = arith.mulf %221, %220 : vector<8x128xf32>
    %cst_75 = arith.constant 5.000000e-01 : f32
    %223 = vector.broadcast %cst_75 : f32 to vector<8x128xf32>
    %224 = arith.addf %222, %223 : vector<8x128xf32>
    %225 = vector.extract_strided_slice %212 {offsets = [0, 256], sizes = [8, 128], strides = [1, 1]} : vector<8x512xf32> to vector<8x128xf32>
    %226 = math.tanh %225 : vector<8x128xf32>
    %227 = vector.extract_strided_slice %212 {offsets = [0, 384], sizes = [8, 128], strides = [1, 1]} : vector<8x512xf32> to vector<8x128xf32>
    %228 = math.tanh %227 : vector<8x128xf32>
    %cst_76 = arith.constant 5.000000e-01 : f32
    %229 = vector.broadcast %cst_76 : f32 to vector<8x128xf32>
    %230 = arith.mulf %229, %228 : vector<8x128xf32>
    %cst_77 = arith.constant 5.000000e-01 : f32
    %231 = vector.broadcast %cst_77 : f32 to vector<8x128xf32>
    %232 = arith.addf %230, %231 : vector<8x128xf32>
    %233 = arith.mulf %218, %206 : vector<8x128xf32>
    %234 = arith.mulf %224, %226 : vector<8x128xf32>
    %235 = arith.addf %233, %234 : vector<8x128xf32>
    %236 = math.tanh %235 : vector<8x128xf32>
    %237 = arith.mulf %232, %236 : vector<8x128xf32>
    %c0_78 = arith.constant 0 : index
    %c0_79 = arith.constant 0 : index
    %238 = vector.load %arg5[%c0_78, %c0_79] : memref<8x128xf32, #tpu.memory_space<vmem>>, vector<8x128xf32>
    tpu.vector_store %arg5[%c0_78, %c0_79], %237 {strides = array<i32>} : memref<8x128xf32, #tpu.memory_space<vmem>>, vector<8x128xf32>,
    %c0_80 = arith.constant 0 : index
    %c0_81 = arith.constant 0 : index
    %239 = vector.load %arg6[%c0_80, %c0_81] : memref<8x128xf32, #tpu.memory_space<vmem>>, vector<8x128xf32>
    tpu.vector_store %arg6[%c0_80, %c0_81], %235 {strides = array<i32>} : memref<8x128xf32, #tpu.memory_space<vmem>>, vector<8x128xf32>,
    %c0_i32_82 = arith.constant 0 : i32
    %240 = arith.cmpi eq, %arg1, %c0_i32_82 : i32
    %241 = arith.extui %240 : i1 to i32
    %c0_i32_83 = arith.constant 0 : i32
    %242 = arith.cmpi ne, %241, %c0_i32_83 : i32
    scf.if %242 {
      %c0_84 = arith.constant 0 : index
      %c0_85 = arith.constant 0 : index
      %243 = vector.load %arg4[%c0_84, %c0_85] : memref<8x128xf32, #tpu.memory_space<vmem>>, vector<8x128xf32>
      tpu.vector_store %arg4[%c0_84, %c0_85], %237 {strides = array<i32>} : memref<8x128xf32, #tpu.memory_space<vmem>>, vector<8x128xf32>,
    } else {
    }
    return
  }
  func.func @transform_0(%arg0: i32, %arg1: i32) -> (i32, i32, i32) {
    %c0_i32 = arith.constant 0 : i32
    %c0_i32_0 = arith.constant 0 : i32
    return %arg1, %arg0, %c0_i32 : i32, i32, i32
  }
  func.func @transform_1(%arg0: i32, %arg1: i32) -> (i32, i32) {
    %c0_i32 = arith.constant 0 : i32
    %c0_i32_0 = arith.constant 0 : i32
    %c0_i32_1 = arith.constant 0 : i32
    return %c0_i32, %c0_i32_0 : i32, i32
  }
  func.func @transform_2(%arg0: i32, %arg1: i32) -> (i32, i32) {
    %c0_i32 = arith.constant 0 : i32
    %c0_i32_0 = arith.constant 0 : i32
    return %arg0, %c0_i32 : i32, i32
  }
}

</mosaic_0001>

<llo_original>
// kernel: tpu_custom_call.1
$region0: #{tpu_custom_call.1}
  #allocation0 [shape = 'u32[]', space=smem, size = 0x4, offset = 0x4, fixed_abs, tag = 'smem constant byte address 0x4 - core index']
  #allocation1 [shape = 'u32[72,128]{1,0:T(1,128)}', space=vmem, size = 0x9000, scoped, tag = 'internal scratch']
  #allocation2 [shape = 'f32[8,128]{1,0:T(8,128)}', space=vmem, size = 0x1000, scoped, tag = 'scratch operand']
  #allocation3 [shape = 'f32[8,128]{1,0:T(8,128)}', space=vmem, size = 0x1000, scoped, tag = 'scratch operand']
  %s0 = inlined_call_operand.hbm [shape: f32[8,8,512], index: 0, kind: input, shape index: {}]
  %s1 = inlined_call_operand.hbm [shape: f32[128,512], index: 1, kind: input, shape index: {}]
  %s2 = inlined_call_operand.hbm [shape: f32[8,128], index: 2, kind: output, shape index: {}]
  %s3 = sld [smem:[#allocation0]]
  $region34: #{tpu_custom_call.1} parent=0
    _
  %s5 = ssub.s32 1, %s3
  %s6 = scalar_select 0, %s5, %s3
  $region1: #{tpu_custom_call.1} parent=0
    #allocation4 [shape = 'u8[131072]{0}', space=vmem, size = 0x20000, scoped, tag = 'input window, operand 0, single buffered']
    #allocation5 [shape = 's32[1]{0}', space=sflag, size = 0x4, scoped, tag = 'scoped memory for tpu_custom_call.1']
    #allocation6 [shape = 's32[1]{0}', space=sflag, size = 0x4, scoped, tag = 'scoped memory for tpu_custom_call.1']
    #allocation7 [shape = 'u8[262144]{0}', space=vmem, size = 0x40000, scoped, tag = 'input window, operand 1, single buffered']
    #allocation8 [shape = 's32[1]{0}', space=sflag, size = 0x4, scoped, tag = 'scoped memory for tpu_custom_call.1']
    #allocation9 [shape = 'u8[4096]{0}', space=vmem, size = 0x1000, scoped, tag = 'output window, operand 0, single buffered']
    %7 = vsyncpa [#allocation5], 0
    %8 = vsyncpa [#allocation8], 0
    %9 = vsyncpa [#allocation6], 0
    // Predicated region
    $region2: #{tpu_custom_call.1} parent=1 // pred_check
      _
    $region3: #{tpu_custom_call.1} parent=1 // pred_check_branch
      %11 = sbr.rel (0) target = $region5
    $region4: #{tpu_custom_call.1} parent=1 // pred_region
      %13 = vsyncadd [#allocation5], 0
      %s14 = sshll.u32 %s0, 4
      %s15 = int_to_ptr.hbm [resolvable:$true] %s14
      %s16 = sshll.u32 [#allocation4], 4
      %s17 = int_to_ptr.vmem [resolvable:$true] %s16
      %22 = dma.hbm_to_vmem [thread:$0]  %s15, 4096, %s17, [#allocation5], 512, 512, 32
    $region5: #{tpu_custom_call.1} parent=1 // pred_fallthru
      _
    // Predicated region
    $region6: #{tpu_custom_call.1} parent=1 // pred_check
      _
    $region7: #{tpu_custom_call.1} parent=1 // pred_check_branch
      %24 = sbr.rel (0) target = $region9
    $region8: #{tpu_custom_call.1} parent=1 // pred_region
      %26 = vsyncadd [#allocation8], 0
      %s27 = sshll.u32 %s1, 4
      %s28 = int_to_ptr.hbm [resolvable:$true] %s27
      %s29 = sshll.u32 [#allocation7], 4
      %s30 = int_to_ptr.vmem [resolvable:$true] %s29
      %35 = dma.hbm_to_vmem [thread:$0]  %s28, 8192, %s30, [#allocation8], 512, 512, 32
    $region9: #{tpu_custom_call.1} parent=1 // pred_fallthru
      _
    // Predicated region
    $region10: #{tpu_custom_call.1} parent=1 // pred_check
      _
    $region11: #{tpu_custom_call.1} parent=1 // pred_check_branch
      %37 = sbr.rel (0) target = $region13
    $region12: #{tpu_custom_call.1} parent=1 // pred_region
      %39 = dma.done [#allocation5], 4096
    $region13: #{tpu_custom_call.1} parent=1 // pred_fallthru
      _
    // Predicated region
    $region14: #{tpu_custom_call.1} parent=1 // pred_check
      _
    $region15: #{tpu_custom_call.1} parent=1 // pred_check_branch
      %41 = sbr.rel (0) target = $region17
    $region16: #{tpu_custom_call.1} parent=1 // pred_region
      %43 = dma.done [#allocation8], 8192
    $region17: #{tpu_custom_call.1} parent=1 // pred_fallthru
      _
    %p44 = scmp.eq.s32.totalorder 0, 0
    // Predicated region
    $region18: #{tpu_custom_call.1} parent=1 // pred_check
      %p45 = pneg %p44
    $region19: #{tpu_custom_call.1} parent=1 // pred_check_branch
      %47 = sbr.rel (%p45) target = $region21
    $region20: #{tpu_custom_call.1} parent=1 // pred_region
      %48 = vst [vmem:[#allocation2] sm:$0xff] 0.0
      %49 = vst [vmem:[#allocation3] sm:$0xff] 0.0
    $region21: #{tpu_custom_call.1} parent=1 // pred_fallthru
      _
    %v50 = vld [vmem:[#allocation7] sm:$0xff]
    %v51 = vld [vmem:[#allocation7 + $0x8] sm:$0xff]
    %v52 = vld [vmem:[#allocation7 + $0x10] sm:$0xff]
    %v53 = vld [vmem:[#allocation7 + $0x18] sm:$0xff]
    %v54 = vld [vmem:[#allocation7 + $0x20] sm:$0xff]
    %v55 = vld [vmem:[#allocation7 + $0x28] sm:$0xff]
    %v56 = vld [vmem:[#allocation7 + $0x30] sm:$0xff]
    %v57 = vld [vmem:[#allocation7 + $0x38] sm:$0xff]
    %v58 = vld [vmem:[#allocation7 + $0x40] sm:$0xff]
    %v59 = vld [vmem:[#allocation7 + $0x48] sm:$0xff]
    %v60 = vld [vmem:[#allocation7 + $0x50] sm:$0xff]
    %v61 = vld [vmem:[#allocation7 + $0x58] sm:$0xff]
    %v62 = vld [vmem:[#allocation7 + $0x60] sm:$0xff]
    %v63 = vld [vmem:[#allocation7 + $0x68] sm:$0xff]
    %v64 = vld [vmem:[#allocation7 + $0x70] sm:$0xff]
    %v65 = vld [vmem:[#allocation7 + $0x78] sm:$0xff]
    %v66 = vld [vmem:[#allocation7 + $0x80] sm:$0xff]
    %v67 = vld [vmem:[#allocation7 + $0x88] sm:$0xff]
    %v68 = vld [vmem:[#allocation7 + $0x90] sm:$0xff]
    %v69 = vld [vmem:[#allocation7 + $0x98] sm:$0xff]
    %v70 = vld [vmem:[#allocation7 + $0xa0] sm:$0xff]
    %v71 = vld [vmem:[#allocation7 + $0xa8] sm:$0xff]
    %v72 = vld [vmem:[#allocation7 + $0xb0] sm:$0xff]
    %v73 = vld [vmem:[#allocation7 + $0xb8] sm:$0xff]
    %v74 = vld [vmem:[#allocation7 + $0xc0] sm:$0xff]
    %v75 = vld [vmem:[#allocation7 + $0xc8] sm:$0xff]
    %v76 = vld [vmem:[#allocation7 + $0xd0] sm:$0xff]
    %v77 = vld [vmem:[#allocation7 + $0xd8] sm:$0xff]
    %v78 = vld [vmem:[#allocation7 + $0xe0] sm:$0xff]
    %v79 = vld [vmem:[#allocation7 + $0xe8] sm:$0xff]
    %v80 = vld [vmem:[#allocation7 + $0xf0] sm:$0xff]
    %v81 = vld [vmem:[#allocation7 + $0xf8] sm:$0xff]
    %v82 = vld [vmem:[#allocation7 + $0x100] sm:$0xff]
    %v83 = vld [vmem:[#allocation7 + $0x108] sm:$0xff]
    %v84 = vld [vmem:[#allocation7 + $0x110] sm:$0xff]
    %v85 = vld [vmem:[#allocation7 + $0x118] sm:$0xff]
    %v86 = vld [vmem:[#allocation7 + $0x120] sm:$0xff]
    %v87 = vld [vmem:[#allocation7 + $0x128] sm:$0xff]
    %v88 = vld [vmem:[#allocation7 + $0x130] sm:$0xff]
    %v89 = vld [vmem:[#allocation7 + $0x138] sm:$0xff]
    %v90 = vld [vmem:[#allocation7 + $0x140] sm:$0xff]
    %v91 = vld [vmem:[#allocation7 + $0x148] sm:$0xff]
    %v92 = vld [vmem:[#allocation7 + $0x150] sm:$0xff]
    %v93 = vld [vmem:[#allocation7 + $0x158] sm:$0xff]
    %v94 = vld [vmem:[#allocation7 + $0x160] sm:$0xff]
    %v95 = vld [vmem:[#allocation7 + $0x168] sm:$0xff]
    %v96 = vld [vmem:[#allocation7 + $0x170] sm:$0xff]
    %v97 = vld [vmem:[#allocation7 + $0x178] sm:$0xff]
    %v98 = vld [vmem:[#allocation7 + $0x180] sm:$0xff]
    %v99 = vld [vmem:[#allocation7 + $0x188] sm:$0xff]
    %v100 = vld [vmem:[#allocation7 + $0x190] sm:$0xff]
    %v101 = vld [vmem:[#allocation7 + $0x198] sm:$0xff]
    %v102 = vld [vmem:[#allocation7 + $0x1a0] sm:$0xff]
    %v103 = vld [vmem:[#allocation7 + $0x1a8] sm:$0xff]
    %v104 = vld [vmem:[#allocation7 + $0x1b0] sm:$0xff]
    %v105 = vld [vmem:[#allocation7 + $0x1b8] sm:$0xff]
    %v106 = vld [vmem:[#allocation7 + $0x1c0] sm:$0xff]
    %v107 = vld [vmem:[#allocation7 + $0x1c8] sm:$0xff]
    %v108 = vld [vmem:[#allocation7 + $0x1d0] sm:$0xff]
    %v109 = vld [vmem:[#allocation7 + $0x1d8] sm:$0xff]
    %v110 = vld [vmem:[#allocation7 + $0x1e0] sm:$0xff]
    %v111 = vld [vmem:[#allocation7 + $0x1e8] sm:$0xff]
    %v112 = vld [vmem:[#allocation7 + $0x1f0] sm:$0xff]
    %v113 = vld [vmem:[#allocation7 + $0x1f8] sm:$0xff]
    %v114 = vld [vmem:[#allocation2] sm:$0xff]
    %v115 = vld [vmem:[#allocation3] sm:$0xff]
    %v116 = vld [vmem:[#allocation4] sm:$0xff]
    %v117 = vld [vmem:[#allocation4 + $0x8] sm:$0xff]
    %v118 = vld [vmem:[#allocation4 + $0x10] sm:$0xff]
    %v119 = vld [vmem:[#allocation4 + $0x18] sm:$0xff]
    %120 = vmatpush.msra.mxu0 %v110
    %121 = vmatpush.msra.mxu0 %v106
    %122 = vmatpush.msra.mxu0 %v102
    %123 = vmatpush.msra.mxu0 %v98
    %124 = vmatpush.msra.mxu0 %v94
    %125 = vmatpush.msra.mxu0 %v90
    %126 = vmatpush.msra.mxu0 %v86
    %127 = vmatpush.msra.mxu0 %v82
    %128 = vmatpush.msra.mxu0 %v78
    %129 = vmatpush.msra.mxu0 %v74
    %130 = vmatpush.msra.mxu0 %v70
    %131 = vmatpush.msra.mxu0 %v66
    %132 = vmatpush.msra.mxu0 %v62
    %133 = vmatpush.msra.mxu0 %v58
    %134 = vmatpush.msra.mxu0 %v54
    %135 = vmatpush.msra.mxu0 %v50
    %136 = vmatmul.f32.gmra.mxu0 %v114
    %v137 = vpop.f32.mrf.mxu0
    %v138 = vadd.f32 0.0, %v137
    %139 = vdwg.mxu0
    %140 = vmatpush.msra.mxu0 %v111
    %141 = vmatpush.msra.mxu0 %v107
    %142 = vmatpush.msra.mxu0 %v103
    %143 = vmatpush.msra.mxu0 %v99
    %144 = vmatpush.msra.mxu0 %v95
    %145 = vmatpush.msra.mxu0 %v91
    %146 = vmatpush.msra.mxu0 %v87
    %147 = vmatpush.msra.mxu0 %v83
    %148 = vmatpush.msra.mxu0 %v79
    %149 = vmatpush.msra.mxu0 %v75
    %150 = vmatpush.msra.mxu0 %v71
    %151 = vmatpush.msra.mxu0 %v67
    %152 = vmatpush.msra.mxu0 %v63
    %153 = vmatpush.msra.mxu0 %v59
    %154 = vmatpush.msra.mxu0 %v55
    %155 = vmatpush.msra.mxu0 %v51
    %156 = vmatmul.f32.gmra.mxu0 %v114
    %v157 = vpop.f32.mrf.mxu0
    %v158 = vadd.f32 0.0, %v157
    %159 = vdwg.mxu0
    %160 = vmatpush.msra.mxu0 %v112
    %161 = vmatpush.msra.mxu0 %v108
    %162 = vmatpush.msra.mxu0 %v104
    %163 = vmatpush.msra.mxu0 %v100
    %164 = vmatpush.msra.mxu0 %v96
    %165 = vmatpush.msra.mxu0 %v92
    %166 = vmatpush.msra.mxu0 %v88
    %167 = vmatpush.msra.mxu0 %v84
    %168 = vmatpush.msra.mxu0 %v80
    %169 = vmatpush.msra.mxu0 %v76
    %170 = vmatpush.msra.mxu0 %v72
    %171 = vmatpush.msra.mxu0 %v68
    %172 = vmatpush.msra.mxu0 %v64
    %173 = vmatpush.msra.mxu0 %v60
    %174 = vmatpush.msra.mxu0 %v56
    %175 = vmatpush.msra.mxu0 %v52
    %176 = vmatmul.f32.gmra.mxu0 %v114
    %v177 = vpop.f32.mrf.mxu0
    %v178 = vadd.f32 0.0, %v177
    %179 = vdwg.mxu0
    %180 = vmatpush.msra.mxu0 %v113
    %181 = vmatpush.msra.mxu0 %v109
    %182 = vmatpush.msra.mxu0 %v105
    %183 = vmatpush.msra.mxu0 %v101
    %184 = vmatpush.msra.mxu0 %v97
    %185 = vmatpush.msra.mxu0 %v93
    %186 = vmatpush.msra.mxu0 %v89
    %187 = vmatpush.msra.mxu0 %v85
    %188 = vmatpush.msra.mxu0 %v81
    %189 = vmatpush.msra.mxu0 %v77
    %190 = vmatpush.msra.mxu0 %v73
    %191 = vmatpush.msra.mxu0 %v69
    %192 = vmatpush.msra.mxu0 %v65
    %193 = vmatpush.msra.mxu0 %v61
    %194 = vmatpush.msra.mxu0 %v57
    %195 = vmatpush.msra.mxu0 %v53
    %196 = vmatmul.f32.gmra.mxu0 %v114
    %v197 = vpop.f32.mrf.mxu0
    %v198 = vadd.f32 0.0, %v197
    %199 = vdwg.mxu0
    %v200 = vadd.f32 %v116, %v138
    %v201 = vadd.f32 %v117, %v158
    %v202 = vadd.f32 %v118, %v178
    %v203 = vadd.f32 %v119, %v198
    %v204 = vtanh.pop %v200
    %v205 = vmul.f32 %v204, 0.5
    %v206 = vadd.f32 %v205, 0.5
    %v207 = vtanh.pop %v201
    %v208 = vmul.f32 %v207, 0.5
    %v209 = vadd.f32 %v208, 0.5
    %v210 = vtanh.pop %v202
    %v211 = vtanh.pop %v203
    %v212 = vmul.f32 %v211, 0.5
    %v213 = vadd.f32 %v212, 0.5
    %v214 = vmul.f32 %v206, %v115
    %v215 = vmul.f32 %v209, %v210
    %v216 = vadd.f32 %v214, %v215
    %v217 = vtanh.pop %v216
    %v218 = vmul.f32 %v213, %v217
    %s219 = scalar_lea.vmem [#allocation4], 32
    %v220 = vld [vmem:[%s219] sm:$0xff]
    %v221 = vld [vmem:[%s219 + $0x8] sm:$0xff]
    %v222 = vld [vmem:[%s219 + $0x10] sm:$0xff]
    %v223 = vld [vmem:[%s219 + $0x18] sm:$0xff]
    %224 = vmatpush.msra.mxu0 %v110
    %225 = vmatpush.msra.mxu0 %v106
    %226 = vmatpush.msra.mxu0 %v102
    %227 = vmatpush.msra.mxu0 %v98
    %228 = vmatpush.msra.mxu0 %v94
    %229 = vmatpush.msra.mxu0 %v90
    %230 = vmatpush.msra.mxu0 %v86
    %231 = vmatpush.msra.mxu0 %v82
    %232 = vmatpush.msra.mxu0 %v78
    %233 = vmatpush.msra.mxu0 %v74
    %234 = vmatpush.msra.mxu0 %v70
    %235 = vmatpush.msra.mxu0 %v66
    %236 = vmatpush.msra.mxu0 %v62
    %237 = vmatpush.msra.mxu0 %v58
    %238 = vmatpush.msra.mxu0 %v54
    %239 = vmatpush.msra.mxu0 %v50
    %240 = vmatmul.f32.gmra.mxu0 %v218
    %v241 = vpop.f32.mrf.mxu0
    %v242 = vadd.f32 0.0, %v241
    %243 = vdwg.mxu0
    %244 = vmatpush.msra.mxu0 %v111
    %245 = vmatpush.msra.mxu0 %v107
    %246 = vmatpush.msra.mxu0 %v103
    %247 = vmatpush.msra.mxu0 %v99
    %248 = vmatpush.msra.mxu0 %v95
    %249 = vmatpush.msra.mxu0 %v91
    %250 = vmatpush.msra.mxu0 %v87
    %251 = vmatpush.msra.mxu0 %v83
    %252 = vmatpush.msra.mxu0 %v79
    %253 = vmatpush.msra.mxu0 %v75
    %254 = vmatpush.msra.mxu0 %v71
    %255 = vmatpush.msra.mxu0 %v67
    %256 = vmatpush.msra.mxu0 %v63
    %257 = vmatpush.msra.mxu0 %v59
    %258 = vmatpush.msra.mxu0 %v55
    %259 = vmatpush.msra.mxu0 %v51
    %260 = vmatmul.f32.gmra.mxu0 %v218
    %v261 = vpop.f32.mrf.mxu0
    %v262 = vadd.f32 0.0, %v261
    %263 = vdwg.mxu0
    %264 = vmatpush.msra.mxu0 %v112
    %265 = vmatpush.msra.mxu0 %v108
    %266 = vmatpush.msra.mxu0 %v104
    %267 = vmatpush.msra.mxu0 %v100
    %268 = vmatpush.msra.mxu0 %v96
    %269 = vmatpush.msra.mxu0 %v92
    %270 = vmatpush.msra.mxu0 %v88
    %271 = vmatpush.msra.mxu0 %v84
    %272 = vmatpush.msra.mxu0 %v80
    %273 = vmatpush.msra.mxu0 %v76
    %274 = vmatpush.msra.mxu0 %v72
    %275 = vmatpush.msra.mxu0 %v68
    %276 = vmatpush.msra.mxu0 %v64
    %277 = vmatpush.msra.mxu0 %v60
    %278 = vmatpush.msra.mxu0 %v56
    %279 = vmatpush.msra.mxu0 %v52
    %280 = vmatmul.f32.gmra.mxu0 %v218
    %v281 = vpop.f32.mrf.mxu0
    %v282 = vadd.f32 0.0, %v281
    %283 = vdwg.mxu0
    %284 = vmatpush.msra.mxu0 %v113
    %285 = vmatpush.msra.mxu0 %v109
    %286 = vmatpush.msra.mxu0 %v105
    %287 = vmatpush.msra.mxu0 %v101
    %288 = vmatpush.msra.mxu0 %v97
    %289 = vmatpush.msra.mxu0 %v93
    %290 = vmatpush.msra.mxu0 %v89
    %291 = vmatpush.msra.mxu0 %v85
    %292 = vmatpush.msra.mxu0 %v81
    %293 = vmatpush.msra.mxu0 %v77
    %294 = vmatpush.msra.mxu0 %v73
    %295 = vmatpush.msra.mxu0 %v69
    %296 = vmatpush.msra.mxu0 %v65
    %297 = vmatpush.msra.mxu0 %v61
    %298 = vmatpush.msra.mxu0 %v57
    %299 = vmatpush.msra.mxu0 %v53
    %300 = vmatmul.f32.gmra.mxu0 %v218
    %v301 = vpop.f32.mrf.mxu0
    %v302 = vadd.f32 0.0, %v301
    %303 = vdwg.mxu0
    %v304 = vadd.f32 %v220, %v242
    %v305 = vadd.f32 %v221, %v262
    %v306 = vadd.f32 %v222, %v282
    %v307 = vadd.f32 %v223, %v302
    %v308 = vtanh.pop %v304
    %v309 = vmul.f32 %v308, 0.5
    %v310 = vadd.f32 %v309, 0.5
    %v311 = vtanh.pop %v305
    %v312 = vmul.f32 %v311, 0.5
    %v313 = vadd.f32 %v312, 0.5
    %v314 = vtanh.pop %v306
    %v315 = vtanh.pop %v307
    %v316 = vmul.f32 %v315, 0.5
    %v317 = vadd.f32 %v316, 0.5
    %v318 = vmul.f32 %v310, %v216
    %v319 = vmul.f32 %v313, %v314
    %v320 = vadd.f32 %v318, %v319
    %v321 = vtanh.pop %v320
    %v322 = vmul.f32 %v317, %v321
    %s323 = scalar_lea.vmem [#allocation4], 64
    %v324 = vld [vmem:[%s323] sm:$0xff]
    %v325 = vld [vmem:[%s323 + $0x8] sm:$0xff]
    %v326 = vld [vmem:[%s323 + $0x10] sm:$0xff]
    %v327 = vld [vmem:[%s323 + $0x18] sm:$0xff]
    %328 = vmatpush.msra.mxu0 %v110
    %329 = vmatpush.msra.mxu0 %v106
    %330 = vmatpush.msra.mxu0 %v102
    %331 = vmatpush.msra.mxu0 %v98
    %332 = vmatpush.msra.mxu0 %v94
    %333 = vmatpush.msra.mxu0 %v90
    %334 = vmatpush.msra.mxu0 %v86
    %335 = vmatpush.msra.mxu0 %v82
    %336 = vmatpush.msra.mxu0 %v78
    %337 = vmatpush.msra.mxu0 %v74
    %338 = vmatpush.msra.mxu0 %v70
    %339 = vmatpush.msra.mxu0 %v66
    %340 = vmatpush.msra.mxu0 %v62
    %341 = vmatpush.msra.mxu0 %v58
    %342 = vmatpush.msra.mxu0 %v54
    %343 = vmatpush.msra.mxu0 %v50
    %344 = vmatmul.f32.gmra.mxu0 %v322
    %v345 = vpop.f32.mrf.mxu0
    %v346 = vadd.f32 0.0, %v345
    %347 = vdwg.mxu0
    %348 = vmatpush.msra.mxu0 %v111
    %349 = vmatpush.msra.mxu0 %v107
    %350 = vmatpush.msra.mxu0 %v103
    %351 = vmatpush.msra.mxu0 %v99
    %352 = vmatpush.msra.mxu0 %v95
    %353 = vmatpush.msra.mxu0 %v91
    %354 = vmatpush.msra.mxu0 %v87
    %355 = vmatpush.msra.mxu0 %v83
    %356 = vmatpush.msra.mxu0 %v79
    %357 = vmatpush.msra.mxu0 %v75
    %358 = vmatpush.msra.mxu0 %v71
    %359 = vmatpush.msra.mxu0 %v67
    %360 = vmatpush.msra.mxu0 %v63
    %361 = vmatpush.msra.mxu0 %v59
    %362 = vmatpush.msra.mxu0 %v55
    %363 = vmatpush.msra.mxu0 %v51
    %364 = vmatmul.f32.gmra.mxu0 %v322
    %v365 = vpop.f32.mrf.mxu0
    %v366 = vadd.f32 0.0, %v365
    %367 = vdwg.mxu0
    %368 = vmatpush.msra.mxu0 %v112
    %369 = vmatpush.msra.mxu0 %v108
    %370 = vmatpush.msra.mxu0 %v104
    %371 = vmatpush.msra.mxu0 %v100
    %372 = vmatpush.msra.mxu0 %v96
    %373 = vmatpush.msra.mxu0 %v92
    %374 = vmatpush.msra.mxu0 %v88
    %375 = vmatpush.msra.mxu0 %v84
    %376 = vmatpush.msra.mxu0 %v80
    %377 = vmatpush.msra.mxu0 %v76
    %378 = vmatpush.msra.mxu0 %v72
    %379 = vmatpush.msra.mxu0 %v68
    %380 = vmatpush.msra.mxu0 %v64
    %381 = vmatpush.msra.mxu0 %v60
    %382 = vmatpush.msra.mxu0 %v56
    %383 = vmatpush.msra.mxu0 %v52
    %384 = vmatmul.f32.gmra.mxu0 %v322
    %v385 = vpop.f32.mrf.mxu0
    %v386 = vadd.f32 0.0, %v385
    %387 = vdwg.mxu0
    %388 = vmatpush.msra.mxu0 %v113
    %389 = vmatpush.msra.mxu0 %v109
    %390 = vmatpush.msra.mxu0 %v105
    %391 = vmatpush.msra.mxu0 %v101
    %392 = vmatpush.msra.mxu0 %v97
    %393 = vmatpush.msra.mxu0 %v93
    %394 = vmatpush.msra.mxu0 %v89
    %395 = vmatpush.msra.mxu0 %v85
    %396 = vmatpush.msra.mxu0 %v81
    %397 = vmatpush.msra.mxu0 %v77
    %398 = vmatpush.msra.mxu0 %v73
    %399 = vmatpush.msra.mxu0 %v69
    %400 = vmatpush.msra.mxu0 %v65
    %401 = vmatpush.msra.mxu0 %v61
    %402 = vmatpush.msra.mxu0 %v57
    %403 = vmatpush.msra.mxu0 %v53
    %404 = vmatmul.f32.gmra.mxu0 %v322
    %v405 = vpop.f32.mrf.mxu0
    %v406 = vadd.f32 0.0, %v405
    %407 = vdwg.mxu0
    %v408 = vadd.f32 %v324, %v346
    %v409 = vadd.f32 %v325, %v366
    %v410 = vadd.f32 %v326, %v386
    %v411 = vadd.f32 %v327, %v406
    %v412 = vtanh.pop %v408
    %v413 = vmul.f32 %v412, 0.5
    %v414 = vadd.f32 %v413, 0.5
    %v415 = vtanh.pop %v409
    %v416 = vmul.f32 %v415, 0.5
    %v417 = vadd.f32 %v416, 0.5
    %v418 = vtanh.pop %v410
    %v419 = vtanh.pop %v411
    %v420 = vmul.f32 %v419, 0.5
    %v421 = vadd.f32 %v420, 0.5
    %v422 = vmul.f32 %v414, %v320
    %v423 = vmul.f32 %v417, %v418
    %v424 = vadd.f32 %v422, %v423
    %v425 = vtanh.pop %v424
    %v426 = vmul.f32 %v421, %v425
    %s427 = scalar_lea.vmem [#allocation4], 96
    %v428 = vld [vmem:[%s427] sm:$0xff]
    %v429 = vld [vmem:[%s427 + $0x8] sm:$0xff]
    %v430 = vld [vmem:[%s427 + $0x10] sm:$0xff]
    %v431 = vld [vmem:[%s427 + $0x18] sm:$0xff]
    %432 = vmatpush.msra.mxu0 %v110
    %433 = vmatpush.msra.mxu0 %v106
    %434 = vmatpush.msra.mxu0 %v102
    %435 = vmatpush.msra.mxu0 %v98
    %436 = vmatpush.msra.mxu0 %v94
    %437 = vmatpush.msra.mxu0 %v90
    %438 = vmatpush.msra.mxu0 %v86
    %439 = vmatpush.msra.mxu0 %v82
    %440 = vmatpush.msra.mxu0 %v78
    %441 = vmatpush.msra.mxu0 %v74
    %442 = vmatpush.msra.mxu0 %v70
    %443 = vmatpush.msra.mxu0 %v66
    %444 = vmatpush.msra.mxu0 %v62
    %445 = vmatpush.msra.mxu0 %v58
    %446 = vmatpush.msra.mxu0 %v54
    %447 = vmatpush.msra.mxu0 %v50
    %448 = vmatmul.f32.gmra.mxu0 %v426
    %v449 = vpop.f32.mrf.mxu0
    %v450 = vadd.f32 0.0, %v449
    %451 = vdwg.mxu0
    %452 = vmatpush.msra.mxu0 %v111
    %453 = vmatpush.msra.mxu0 %v107
    %454 = vmatpush.msra.mxu0 %v103
    %455 = vmatpush.msra.mxu0 %v99
    %456 = vmatpush.msra.mxu0 %v95
    %457 = vmatpush.msra.mxu0 %v91
    %458 = vmatpush.msra.mxu0 %v87
    %459 = vmatpush.msra.mxu0 %v83
    %460 = vmatpush.msra.mxu0 %v79
    %461 = vmatpush.msra.mxu0 %v75
    %462 = vmatpush.msra.mxu0 %v71
    %463 = vmatpush.msra.mxu0 %v67
    %464 = vmatpush.msra.mxu0 %v63
    %465 = vmatpush.msra.mxu0 %v59
    %466 = vmatpush.msra.mxu0 %v55
    %467 = vmatpush.msra.mxu0 %v51
    %468 = vmatmul.f32.gmra.mxu0 %v426
    %v469 = vpop.f32.mrf.mxu0
    %v470 = vadd.f32 0.0, %v469
    %471 = vdwg.mxu0
    %472 = vmatpush.msra.mxu0 %v112
    %473 = vmatpush.msra.mxu0 %v108
    %474 = vmatpush.msra.mxu0 %v104
    %475 = vmatpush.msra.mxu0 %v100
    %476 = vmatpush.msra.mxu0 %v96
    %477 = vmatpush.msra.mxu0 %v92
    %478 = vmatpush.msra.mxu0 %v88
    %479 = vmatpush.msra.mxu0 %v84
    %480 = vmatpush.msra.mxu0 %v80
    %481 = vmatpush.msra.mxu0 %v76
    %482 = vmatpush.msra.mxu0 %v72
    %483 = vmatpush.msra.mxu0 %v68
    %484 = vmatpush.msra.mxu0 %v64
    %485 = vmatpush.msra.mxu0 %v60
    %486 = vmatpush.msra.mxu0 %v56
    %487 = vmatpush.msra.mxu0 %v52
    %488 = vmatmul.f32.gmra.mxu0 %v426
    %v489 = vpop.f32.mrf.mxu0
    %v490 = vadd.f32 0.0, %v489
    %491 = vdwg.mxu0
    %492 = vmatpush.msra.mxu0 %v113
    %493 = vmatpush.msra.mxu0 %v109
    %494 = vmatpush.msra.mxu0 %v105
    %495 = vmatpush.msra.mxu0 %v101
    %496 = vmatpush.msra.mxu0 %v97
    %497 = vmatpush.msra.mxu0 %v93
    %498 = vmatpush.msra.mxu0 %v89
    %499 = vmatpush.msra.mxu0 %v85
    %500 = vmatpush.msra.mxu0 %v81
    %501 = vmatpush.msra.mxu0 %v77
    %502 = vmatpush.msra.mxu0 %v73
    %503 = vmatpush.msra.mxu0 %v69
    %504 = vmatpush.msra.mxu0 %v65
    %505 = vmatpush.msra.mxu0 %v61
    %506 = vmatpush.msra.mxu0 %v57
    %507 = vmatpush.msra.mxu0 %v53
    %508 = vmatmul.f32.gmra.mxu0 %v426
    %v509 = vpop.f32.mrf.mxu0
    %v510 = vadd.f32 0.0, %v509
    %511 = vdwg.mxu0
    %v512 = vadd.f32 %v428, %v450
    %v513 = vadd.f32 %v429, %v470
    %v514 = vadd.f32 %v430, %v490
    %v515 = vadd.f32 %v431, %v510
    %v516 = vtanh.pop %v512
    %v517 = vmul.f32 %v516, 0.5
    %v518 = vadd.f32 %v517, 0.5
    %v519 = vtanh.pop %v513
    %v520 = vmul.f32 %v519, 0.5
    %v521 = vadd.f32 %v520, 0.5
    %v522 = vtanh.pop %v514
    %v523 = vtanh.pop %v515
    %v524 = vmul.f32 %v523, 0.5
    %v525 = vadd.f32 %v524, 0.5
    %v526 = vmul.f32 %v518, %v424
    %v527 = vmul.f32 %v521, %v522
    %v528 = vadd.f32 %v526, %v527
    %v529 = vtanh.pop %v528
    %v530 = vmul.f32 %v525, %v529
    %s531 = scalar_lea.vmem [#allocation4], 128
    %v532 = vld [vmem:[%s531] sm:$0xff]
    %v533 = vld [vmem:[%s531 + $0x8] sm:$0xff]
    %v534 = vld [vmem:[%s531 + $0x10] sm:$0xff]
    %v535 = vld [vmem:[%s531 + $0x18] sm:$0xff]
    %536 = vmatpush.msra.mxu0 %v110
    %537 = vmatpush.msra.mxu0 %v106
    %538 = vmatpush.msra.mxu0 %v102
    %539 = vmatpush.msra.mxu0 %v98
    %540 = vmatpush.msra.mxu0 %v94
    %541 = vmatpush.msra.mxu0 %v90
    %542 = vmatpush.msra.mxu0 %v86
    %543 = vmatpush.msra.mxu0 %v82
    %544 = vmatpush.msra.mxu0 %v78
    %545 = vmatpush.msra.mxu0 %v74
    %546 = vmatpush.msra.mxu0 %v70
    %547 = vmatpush.msra.mxu0 %v66
    %548 = vmatpush.msra.mxu0 %v62
    %549 = vmatpush.msra.mxu0 %v58
    %550 = vmatpush.msra.mxu0 %v54
    %551 = vmatpush.msra.mxu0 %v50
    %552 = vmatmul.f32.gmra.mxu0 %v530
    %v553 = vpop.f32.mrf.mxu0
    %v554 = vadd.f32 0.0, %v553
    %555 = vdwg.mxu0
    %556 = vmatpush.msra.mxu0 %v111
    %557 = vmatpush.msra.mxu0 %v107
    %558 = vmatpush.msra.mxu0 %v103
    %559 = vmatpush.msra.mxu0 %v99
    %560 = vmatpush.msra.mxu0 %v95
    %561 = vmatpush.msra.mxu0 %v91
    %562 = vmatpush.msra.mxu0 %v87
    %563 = vmatpush.msra.mxu0 %v83
    %564 = vmatpush.msra.mxu0 %v79
    %565 = vmatpush.msra.mxu0 %v75
    %566 = vmatpush.msra.mxu0 %v71
    %567 = vmatpush.msra.mxu0 %v67
    %568 = vmatpush.msra.mxu0 %v63
    %569 = vmatpush.msra.mxu0 %v59
    %570 = vmatpush.msra.mxu0 %v55
    %571 = vmatpush.msra.mxu0 %v51
    %572 = vmatmul.f32.gmra.mxu0 %v530
    %v573 = vpop.f32.mrf.mxu0
    %v574 = vadd.f32 0.0, %v573
    %575 = vdwg.mxu0
    %576 = vmatpush.msra.mxu0 %v112
    %577 = vmatpush.msra.mxu0 %v108
    %578 = vmatpush.msra.mxu0 %v104
    %579 = vmatpush.msra.mxu0 %v100
    %580 = vmatpush.msra.mxu0 %v96
    %581 = vmatpush.msra.mxu0 %v92
    %582 = vmatpush.msra.mxu0 %v88
    %583 = vmatpush.msra.mxu0 %v84
    %584 = vmatpush.msra.mxu0 %v80
    %585 = vmatpush.msra.mxu0 %v76
    %586 = vmatpush.msra.mxu0 %v72
    %587 = vmatpush.msra.mxu0 %v68
    %588 = vmatpush.msra.mxu0 %v64
    %589 = vmatpush.msra.mxu0 %v60
    %590 = vmatpush.msra.mxu0 %v56
    %591 = vmatpush.msra.mxu0 %v52
    %592 = vmatmul.f32.gmra.mxu0 %v530
    %v593 = vpop.f32.mrf.mxu0
    %v594 = vadd.f32 0.0, %v593
    %595 = vdwg.mxu0
    %596 = vmatpush.msra.mxu0 %v113
    %597 = vmatpush.msra.mxu0 %v109
    %598 = vmatpush.msra.mxu0 %v105
    %599 = vmatpush.msra.mxu0 %v101
    %600 = vmatpush.msra.mxu0 %v97
    %601 = vmatpush.msra.mxu0 %v93
    %602 = vmatpush.msra.mxu0 %v89
    %603 = vmatpush.msra.mxu0 %v85
    %604 = vmatpush.msra.mxu0 %v81
    %605 = vmatpush.msra.mxu0 %v77
    %606 = vmatpush.msra.mxu0 %v73
    %607 = vmatpush.msra.mxu0 %v69
    %608 = vmatpush.msra.mxu0 %v65
    %609 = vmatpush.msra.mxu0 %v61
    %610 = vmatpush.msra.mxu0 %v57
    %611 = vmatpush.msra.mxu0 %v53
    %612 = vmatmul.f32.gmra.mxu0 %v530
    %v613 = vpop.f32.mrf.mxu0
    %v614 = vadd.f32 0.0, %v613
    %615 = vdwg.mxu0
    %v616 = vadd.f32 %v532, %v554
    %v617 = vadd.f32 %v533, %v574
    %v618 = vadd.f32 %v534, %v594
    %v619 = vadd.f32 %v535, %v614
    %v620 = vtanh.pop %v616
    %v621 = vmul.f32 %v620, 0.5
    %v622 = vadd.f32 %v621, 0.5
    %v623 = vtanh.pop %v617
    %v624 = vmul.f32 %v623, 0.5
    %v625 = vadd.f32 %v624, 0.5
    %v626 = vtanh.pop %v618
    %v627 = vtanh.pop %v619
    %v628 = vmul.f32 %v627, 0.5
    %v629 = vadd.f32 %v628, 0.5
    %v630 = vmul.f32 %v622, %v528
    %v631 = vmul.f32 %v625, %v626
    %v632 = vadd.f32 %v630, %v631
    %v633 = vtanh.pop %v632
    %v634 = vmul.f32 %v629, %v633
    %s635 = scalar_lea.vmem [#allocation4], 160
    %v636 = vld [vmem:[%s635] sm:$0xff]
    %v637 = vld [vmem:[%s635 + $0x8] sm:$0xff]
    %v638 = vld [vmem:[%s635 + $0x10] sm:$0xff]
    %v639 = vld [vmem:[%s635 + $0x18] sm:$0xff]
    %640 = vmatpush.msra.mxu0 %v110
    %641 = vmatpush.msra.mxu0 %v106
    %642 = vmatpush.msra.mxu0 %v102
    %643 = vmatpush.msra.mxu0 %v98
    %644 = vmatpush.msra.mxu0 %v94
    %645 = vmatpush.msra.mxu0 %v90
    %646 = vmatpush.msra.mxu0 %v86
    %647 = vmatpush.msra.mxu0 %v82
    %648 = vmatpush.msra.mxu0 %v78
    %649 = vmatpush.msra.mxu0 %v74
    %650 = vmatpush.msra.mxu0 %v70
    %651 = vmatpush.msra.mxu0 %v66
    %652 = vmatpush.msra.mxu0 %v62
    %653 = vmatpush.msra.mxu0 %v58
    %654 = vmatpush.msra.mxu0 %v54
    %655 = vmatpush.msra.mxu0 %v50
    %656 = vmatmul.f32.gmra.mxu0 %v634
    %v657 = vpop.f32.mrf.mxu0
    %v658 = vadd.f32 0.0, %v657
    %659 = vdwg.mxu0
    %660 = vmatpush.msra.mxu0 %v111
    %661 = vmatpush.msra.mxu0 %v107
    %662 = vmatpush.msra.mxu0 %v103
    %663 = vmatpush.msra.mxu0 %v99
    %664 = vmatpush.msra.mxu0 %v95
    %665 = vmatpush.msra.mxu0 %v91
    %666 = vmatpush.msra.mxu0 %v87
    %667 = vmatpush.msra.mxu0 %v83
    %668 = vmatpush.msra.mxu0 %v79
    %669 = vmatpush.msra.mxu0 %v75
    %670 = vmatpush.msra.mxu0 %v71
    %671 = vmatpush.msra.mxu0 %v67
    %672 = vmatpush.msra.mxu0 %v63
    %673 = vmatpush.msra.mxu0 %v59
    %674 = vmatpush.msra.mxu0 %v55
    %675 = vmatpush.msra.mxu0 %v51
    %676 = vmatmul.f32.gmra.mxu0 %v634
    %v677 = vpop.f32.mrf.mxu0
    %v678 = vadd.f32 0.0, %v677
    %679 = vdwg.mxu0
    %680 = vmatpush.msra.mxu0 %v112
    %681 = vmatpush.msra.mxu0 %v108
    %682 = vmatpush.msra.mxu0 %v104
    %683 = vmatpush.msra.mxu0 %v100
    %684 = vmatpush.msra.mxu0 %v96
    %685 = vmatpush.msra.mxu0 %v92
    %686 = vmatpush.msra.mxu0 %v88
    %687 = vmatpush.msra.mxu0 %v84
    %688 = vmatpush.msra.mxu0 %v80
    %689 = vmatpush.msra.mxu0 %v76
    %690 = vmatpush.msra.mxu0 %v72
    %691 = vmatpush.msra.mxu0 %v68
    %692 = vmatpush.msra.mxu0 %v64
    %693 = vmatpush.msra.mxu0 %v60
    %694 = vmatpush.msra.mxu0 %v56
    %695 = vmatpush.msra.mxu0 %v52
    %696 = vmatmul.f32.gmra.mxu0 %v634
    %v697 = vpop.f32.mrf.mxu0
    %v698 = vadd.f32 0.0, %v697
    %699 = vdwg.mxu0
    %700 = vmatpush.msra.mxu0 %v113
    %701 = vmatpush.msra.mxu0 %v109
    %702 = vmatpush.msra.mxu0 %v105
    %703 = vmatpush.msra.mxu0 %v101
    %704 = vmatpush.msra.mxu0 %v97
    %705 = vmatpush.msra.mxu0 %v93
    %706 = vmatpush.msra.mxu0 %v89
    %707 = vmatpush.msra.mxu0 %v85
    %708 = vmatpush.msra.mxu0 %v81
    %709 = vmatpush.msra.mxu0 %v77
    %710 = vmatpush.msra.mxu0 %v73
    %711 = vmatpush.msra.mxu0 %v69
    %712 = vmatpush.msra.mxu0 %v65
    %713 = vmatpush.msra.mxu0 %v61
    %714 = vmatpush.msra.mxu0 %v57
    %715 = vmatpush.msra.mxu0 %v53
    %716 = vmatmul.f32.gmra.mxu0 %v634
    %v717 = vpop.f32.mrf.mxu0
    %v718 = vadd.f32 0.0, %v717
    %719 = vdwg.mxu0
    %v720 = vadd.f32 %v636, %v658
    %v721 = vadd.f32 %v637, %v678
    %v722 = vadd.f32 %v638, %v698
    %v723 = vadd.f32 %v639, %v718
    %v724 = vtanh.pop %v720
    %v725 = vmul.f32 %v724, 0.5
    %v726 = vadd.f32 %v725, 0.5
    %v727 = vtanh.pop %v721
    %v728 = vmul.f32 %v727, 0.5
    %v729 = vadd.f32 %v728, 0.5
    %v730 = vtanh.pop %v722
    %v731 = vtanh.pop %v723
    %v732 = vmul.f32 %v731, 0.5
    %v733 = vadd.f32 %v732, 0.5
    %v734 = vmul.f32 %v726, %v632
    %v735 = vmul.f32 %v729, %v730
    %v736 = vadd.f32 %v734, %v735
    %v737 = vtanh.pop %v736
    %v738 = vmul.f32 %v733, %v737
    %s739 = scalar_lea.vmem [#allocation4], 192
    %v740 = vld [vmem:[%s739] sm:$0xff]
    %v741 = vld [vmem:[%s739 + $0x8] sm:$0xff]
    %v742 = vld [vmem:[%s739 + $0x10] sm:$0xff]
    %v743 = vld [vmem:[%s739 + $0x18] sm:$0xff]
    %744 = vmatpush.msra.mxu0 %v110
    %745 = vmatpush.msra.mxu0 %v106
    %746 = vmatpush.msra.mxu0 %v102
    %747 = vmatpush.msra.mxu0 %v98
    %748 = vmatpush.msra.mxu0 %v94
    %749 = vmatpush.msra.mxu0 %v90
    %750 = vmatpush.msra.mxu0 %v86
    %751 = vmatpush.msra.mxu0 %v82
    %752 = vmatpush.msra.mxu0 %v78
    %753 = vmatpush.msra.mxu0 %v74
    %754 = vmatpush.msra.mxu0 %v70
    %755 = vmatpush.msra.mxu0 %v66
    %756 = vmatpush.msra.mxu0 %v62
    %757 = vmatpush.msra.mxu0 %v58
    %758 = vmatpush.msra.mxu0 %v54
    %759 = vmatpush.msra.mxu0 %v50
    %760 = vmatmul.f32.gmra.mxu0 %v738
    %v761 = vpop.f32.mrf.mxu0
    %v762 = vadd.f32 0.0, %v761
    %763 = vdwg.mxu0
    %764 = vmatpush.msra.mxu0 %v111
    %765 = vmatpush.msra.mxu0 %v107
    %766 = vmatpush.msra.mxu0 %v103
    %767 = vmatpush.msra.mxu0 %v99
    %768 = vmatpush.msra.mxu0 %v95
    %769 = vmatpush.msra.mxu0 %v91
    %770 = vmatpush.msra.mxu0 %v87
    %771 = vmatpush.msra.mxu0 %v83
    %772 = vmatpush.msra.mxu0 %v79
    %773 = vmatpush.msra.mxu0 %v75
    %774 = vmatpush.msra.mxu0 %v71
    %775 = vmatpush.msra.mxu0 %v67
    %776 = vmatpush.msra.mxu0 %v63
    %777 = vmatpush.msra.mxu0 %v59
    %778 = vmatpush.msra.mxu0 %v55
    %779 = vmatpush.msra.mxu0 %v51
    %780 = vmatmul.f32.gmra.mxu0 %v738
    %v781 = vpop.f32.mrf.mxu0
    %v782 = vadd.f32 0.0, %v781
    %783 = vdwg.mxu0
    %784 = vmatpush.msra.mxu0 %v112
    %785 = vmatpush.msra.mxu0 %v108
    %786 = vmatpush.msra.mxu0 %v104
    %787 = vmatpush.msra.mxu0 %v100
    %788 = vmatpush.msra.mxu0 %v96
    %789 = vmatpush.msra.mxu0 %v92
    %790 = vmatpush.msra.mxu0 %v88
    %791 = vmatpush.msra.mxu0 %v84
    %792 = vmatpush.msra.mxu0 %v80
    %793 = vmatpush.msra.mxu0 %v76
    %794 = vmatpush.msra.mxu0 %v72
    %795 = vmatpush.msra.mxu0 %v68
    %796 = vmatpush.msra.mxu0 %v64
    %797 = vmatpush.msra.mxu0 %v60
    %798 = vmatpush.msra.mxu0 %v56
    %799 = vmatpush.msra.mxu0 %v52
    %800 = vmatmul.f32.gmra.mxu0 %v738
    %v801 = vpop.f32.mrf.mxu0
    %v802 = vadd.f32 0.0, %v801
    %803 = vdwg.mxu0
    %804 = vmatpush.msra.mxu0 %v113
    %805 = vmatpush.msra.mxu0 %v109
    %806 = vmatpush.msra.mxu0 %v105
    %807 = vmatpush.msra.mxu0 %v101
    %808 = vmatpush.msra.mxu0 %v97
    %809 = vmatpush.msra.mxu0 %v93
    %810 = vmatpush.msra.mxu0 %v89
    %811 = vmatpush.msra.mxu0 %v85
    %812 = vmatpush.msra.mxu0 %v81
    %813 = vmatpush.msra.mxu0 %v77
    %814 = vmatpush.msra.mxu0 %v73
    %815 = vmatpush.msra.mxu0 %v69
    %816 = vmatpush.msra.mxu0 %v65
    %817 = vmatpush.msra.mxu0 %v61
    %818 = vmatpush.msra.mxu0 %v57
    %819 = vmatpush.msra.mxu0 %v53
    %820 = vmatmul.f32.gmra.mxu0 %v738
    %v821 = vpop.f32.mrf.mxu0
    %v822 = vadd.f32 0.0, %v821
    %823 = vdwg.mxu0
    %v824 = vadd.f32 %v740, %v762
    %v825 = vadd.f32 %v741, %v782
    %v826 = vadd.f32 %v742, %v802
    %v827 = vadd.f32 %v743, %v822
    %v828 = vtanh.pop %v824
    %v829 = vmul.f32 %v828, 0.5
    %v830 = vadd.f32 %v829, 0.5
    %v831 = vtanh.pop %v825
    %v832 = vmul.f32 %v831, 0.5
    %v833 = vadd.f32 %v832, 0.5
    %v834 = vtanh.pop %v826
    %v835 = vtanh.pop %v827
    %v836 = vmul.f32 %v835, 0.5
    %v837 = vadd.f32 %v836, 0.5
    %v838 = vmul.f32 %v830, %v736
    %v839 = vmul.f32 %v833, %v834
    %v840 = vadd.f32 %v838, %v839
    %v841 = vtanh.pop %v840
    %v842 = vmul.f32 %v837, %v841
    %s843 = scalar_lea.vmem [#allocation4], 224
    %v844 = vld [vmem:[%s843] sm:$0xff]
    %v845 = vld [vmem:[%s843 + $0x8] sm:$0xff]
    %v846 = vld [vmem:[%s843 + $0x10] sm:$0xff]
    %v847 = vld [vmem:[%s843 + $0x18] sm:$0xff]
    %848 = vmatpush.msra.mxu0 %v110
    %849 = vmatpush.msra.mxu0 %v106
    %850 = vmatpush.msra.mxu0 %v102
    %851 = vmatpush.msra.mxu0 %v98
    %852 = vmatpush.msra.mxu0 %v94
    %853 = vmatpush.msra.mxu0 %v90
    %854 = vmatpush.msra.mxu0 %v86
    %855 = vmatpush.msra.mxu0 %v82
    %856 = vmatpush.msra.mxu0 %v78
    %857 = vmatpush.msra.mxu0 %v74
    %858 = vmatpush.msra.mxu0 %v70
    %859 = vmatpush.msra.mxu0 %v66
    %860 = vmatpush.msra.mxu0 %v62
    %861 = vmatpush.msra.mxu0 %v58
    %862 = vmatpush.msra.mxu0 %v54
    %863 = vmatpush.msra.mxu0 %v50
    %864 = vmatmul.f32.gmra.mxu0 %v842
    %v865 = vpop.f32.mrf.mxu0
    %v866 = vadd.f32 0.0, %v865
    %867 = vdwg.mxu0
    %868 = vmatpush.msra.mxu0 %v111
    %869 = vmatpush.msra.mxu0 %v107
    %870 = vmatpush.msra.mxu0 %v103
    %871 = vmatpush.msra.mxu0 %v99
    %872 = vmatpush.msra.mxu0 %v95
    %873 = vmatpush.msra.mxu0 %v91
    %874 = vmatpush.msra.mxu0 %v87
    %875 = vmatpush.msra.mxu0 %v83
    %876 = vmatpush.msra.mxu0 %v79
    %877 = vmatpush.msra.mxu0 %v75
    %878 = vmatpush.msra.mxu0 %v71
    %879 = vmatpush.msra.mxu0 %v67
    %880 = vmatpush.msra.mxu0 %v63
    %881 = vmatpush.msra.mxu0 %v59
    %882 = vmatpush.msra.mxu0 %v55
    %883 = vmatpush.msra.mxu0 %v51
    %884 = vmatmul.f32.gmra.mxu0 %v842
    %v885 = vpop.f32.mrf.mxu0
    %v886 = vadd.f32 0.0, %v885
    %887 = vdwg.mxu0
    %888 = vmatpush.msra.mxu0 %v112
    %889 = vmatpush.msra.mxu0 %v108
    %890 = vmatpush.msra.mxu0 %v104
    %891 = vmatpush.msra.mxu0 %v100
    %892 = vmatpush.msra.mxu0 %v96
    %893 = vmatpush.msra.mxu0 %v92
    %894 = vmatpush.msra.mxu0 %v88
    %895 = vmatpush.msra.mxu0 %v84
    %896 = vmatpush.msra.mxu0 %v80
    %897 = vmatpush.msra.mxu0 %v76
    %898 = vmatpush.msra.mxu0 %v72
    %899 = vmatpush.msra.mxu0 %v68
    %900 = vmatpush.msra.mxu0 %v64
    %901 = vmatpush.msra.mxu0 %v60
    %902 = vmatpush.msra.mxu0 %v56
    %903 = vmatpush.msra.mxu0 %v52
    %904 = vmatmul.f32.gmra.mxu0 %v842
    %v905 = vpop.f32.mrf.mxu0
    %v906 = vadd.f32 0.0, %v905
    %907 = vdwg.mxu0
    %908 = vmatpush.msra.mxu0 %v113
    %909 = vmatpush.msra.mxu0 %v109
    %910 = vmatpush.msra.mxu0 %v105
    %911 = vmatpush.msra.mxu0 %v101
    %912 = vmatpush.msra.mxu0 %v97
    %913 = vmatpush.msra.mxu0 %v93
    %914 = vmatpush.msra.mxu0 %v89
    %915 = vmatpush.msra.mxu0 %v85
    %916 = vmatpush.msra.mxu0 %v81
    %917 = vmatpush.msra.mxu0 %v77
    %918 = vmatpush.msra.mxu0 %v73
    %919 = vmatpush.msra.mxu0 %v69
    %920 = vmatpush.msra.mxu0 %v65
    %921 = vmatpush.msra.mxu0 %v61
    %922 = vmatpush.msra.mxu0 %v57
    %923 = vmatpush.msra.mxu0 %v53
    %924 = vmatmul.f32.gmra.mxu0 %v842
    %v925 = vpop.f32.mrf.mxu0
    %v926 = vadd.f32 0.0, %v925
    %927 = vdwg.mxu0
    %v928 = vadd.f32 %v844, %v866
    %v929 = vadd.f32 %v845, %v886
    %v930 = vadd.f32 %v846, %v906
    %v931 = vadd.f32 %v847, %v926
    %v932 = vtanh.pop %v928
    %v933 = vmul.f32 %v932, 0.5
    %v934 = vadd.f32 %v933, 0.5
    %v935 = vtanh.pop %v929
    %v936 = vmul.f32 %v935, 0.5
    %v937 = vadd.f32 %v936, 0.5
    %v938 = vtanh.pop %v930
    %v939 = vtanh.pop %v931
    %v940 = vmul.f32 %v939, 0.5
    %v941 = vadd.f32 %v940, 0.5
    %v942 = vmul.f32 %v934, %v840
    %v943 = vmul.f32 %v937, %v938
    %v944 = vadd.f32 %v942, %v943
    %v945 = vtanh.pop %v944
    %v946 = vmul.f32 %v941, %v945
    %947 = vst [vmem:[#allocation2] sm:$0xff] %v946
    %948 = vst [vmem:[#allocation3] sm:$0xff] %v944
    // Predicated region
    $region22: #{tpu_custom_call.1} parent=1 // pred_check
      %p949 = pneg %p44
    $region23: #{tpu_custom_call.1} parent=1 // pred_check_branch
      %951 = sbr.rel (%p949) target = $region25
    $region24: #{tpu_custom_call.1} parent=1 // pred_region
      %952 = vst [vmem:[#allocation9] sm:$0xff] %v946
    $region25: #{tpu_custom_call.1} parent=1 // pred_fallthru
      _
    // Predicated region
    $region26: #{tpu_custom_call.1} parent=1 // pred_check
      _
    $region27: #{tpu_custom_call.1} parent=1 // pred_check_branch
      %954 = sbr.rel (0) target = $region29
    $region28: #{tpu_custom_call.1} parent=1 // pred_region
      %956 = vsyncadd [#allocation6], 0
      %s958 = sshll.u32 [#allocation9], 4
      %s959 = int_to_ptr.vmem [resolvable:$true] %s958
      %s960 = sshll.u32 %s2, 4
      %s961 = int_to_ptr.hbm [resolvable:$true] %s960
      %963 = dma.vmem_to_hbm [thread:$0]  %s959, 128, %s961, [#allocation6]
    $region29: #{tpu_custom_call.1} parent=1 // pred_fallthru
      _
    // Predicated region
    $region30: #{tpu_custom_call.1} parent=1 // pred_check
      _
    $region31: #{tpu_custom_call.1} parent=1 // pred_check_branch
      %965 = sbr.rel (0) target = $region33
    $region32: #{tpu_custom_call.1} parent=1 // pred_region
      %967 = dma.done [#allocation6], 128
    $region33: #{tpu_custom_call.1} parent=1 // pred_fallthru
      _
    %968 = vsyncpa [#allocation5], 1
    %969 = vsyncpa [#allocation8], 1
    %970 = vsyncpa [#allocation6], 1

</llo_original>
